<compile_context>
chip_gen: v6e
topology: v6e:2x2x1
jax: 0.10.0
libtpu: 0.0.40
codegen_flags: <defaults>
</compile_context>

<pallas_src>
import functools

import numpy as np

import jax
import jax.numpy as jnp
from jax.experimental import pallas as pl
from jax.experimental.pallas import tpu as pltpu


_SQRT1_2 = 0.7071067811865476


def _erf(v):
    # Abramowitz & Stegun 7.1.26 polynomial approximation, |err| <= 1.5e-7
    # (plus ~1e-4-level error from the approx reciprocal, well inside tolerance).
    p = 0.3275911
    a1, a2, a3, a4, a5 = (0.254829592, -0.284496736, 1.421413741,
                          -1.453152027, 1.061405429)
    av = jnp.abs(v)
    t = pl.reciprocal(1.0 + p * av, approx=True)       # EUP slot, not a VALU divide
    poly = t * (a1 + t * (a2 + t * (a3 + t * (a4 + t * a5))))
    e = 1.0 - poly * jnp.exp(-av * av)
    return jnp.where(v >= 0.0, e, -e)


def _gelu(v):
    # exact (erf-based) GELU, matching torch.nn.GELU() default
    return 0.5 * v * (1.0 + _erf(v * _SQRT1_2))


def _dw_inception_kernel(x_ref, m_ref, wfirst_ref, wdwpool_ref, wmid_ref,
                         wdw2b_ref, wlast_ref, out_ref, *, W):
    C4 = wlast_ref.shape[0]            # out_dim // 4
    C6 = wmid_ref.shape[1] // 2        # out_dim // 6
    Rdw = 2 * C6                       # rows feeding the two stage-1 dw convs
    L = x_ref.shape[2]                 # lane width (= images_per_block * H*W)

    x = x_ref[0].astype(jnp.float32)                        # (Cin, L)

    m = m_ref[...]                                          # (5, L) host precomputed
    f_up, f_down = m[0:1], m[1:2]      # source row h-1 / h+1 is valid
    f_left, f_right = m[2:3], m[3:4]   # source col w-1 / w+1 is valid
    inv_cnt = m[4:5]                   # 1 / (#valid taps)   (count_include_pad=False)

    def tap_sweep(z, wt):
        # 3x3 neighborhood sweep with per-channel tap weights wt: (9, C, 1),
        # tap-major (ky*3+kx).  Separable border masking: 4 rolls + 4 mask
        # multiplies total; the row masks commute past the column roll because
        # every disagreeing lane is zeroed by the column mask.
        r_up = pltpu.roll(z, W, axis=1) * f_up              # source row h-1
        r_dn = pltpu.roll(z, L - W, axis=1) * f_down        # source row h+1
        rows = (r_up, z, r_dn)
        u = [wt[kx] * rows[0] + wt[3 + kx] * rows[1] + wt[6 + kx] * rows[2]
             for kx in range(3)]
        return (pltpu.roll(u[0], 1, axis=1) * f_left        # source col w-1
                + u[1]
                + pltpu.roll(u[2], L - 1, axis=1) * f_right)

    # ---- fused input-side 1x1 convs: branch1[0] | branch2[0] | branch3[1] | branch0
    y = jnp.dot(wfirst_ref[...], x,
                preferred_element_type=jnp.float32)         # (2*C6+2*C4, L)

    b0 = _gelu(y[Rdw + C4:])                                # branch0 output
    out_ref[0, pl.ds(0, C4), :] = b0.astype(out_ref.dtype)

    # ---- single fused tap sweep: branch1 dw | branch2 dw | branch3 avg-pool ----
    z = jnp.concatenate([_gelu(y[:Rdw]), y[Rdw:Rdw + C4]], axis=0)   # (Rdw+C4, L)
    sw = tap_sweep(z, wdwpool_ref[...])

    b3 = _gelu(sw[Rdw:] * inv_cnt)                          # branch3 output
    out_ref[0, pl.ds(3 * C4, C4), :] = b3.astype(out_ref.dtype)

    # ---- block-diagonal fused 1x1 over both dw outputs ----
    d12 = _gelu(sw[:Rdw])
    gm = _gelu(jnp.dot(wmid_ref[...], d12,
                       preferred_element_type=jnp.float32))  # (2*C4, L)
    out_ref[0, pl.ds(C4, C4), :] = gm[:C4].astype(out_ref.dtype)   # branch1 output

    # ---- branch2 tail: dw3x3 + GELU, 1x1 + GELU ----
    d3 = _gelu(tap_sweep(gm[C4:], wdw2b_ref[...]))
    b2 = _gelu(jnp.dot(wlast_ref[...], d3,
                       preferred_element_type=jnp.float32))
    out_ref[0, pl.ds(2 * C4, C4), :] = b2.astype(out_ref.dtype)


def _default_grid_blocks(n):
    # A 2-way "parallel" grid only helps on parts with 2 TensorCores per chip
    # (v7x); on single-TC v5e/v6e fold the whole batch onto the lane axis.
    try:
        kind = jax.devices()[0].device_kind.lower()
    except Exception:
        kind = ""
    if n >= 2 and n % 2 == 0 and "v7" in kind:
        return 2
    return 1


def _border_masks(images_per_block, H, W):
    hw = H * W
    lane = np.arange(images_per_block * hw)
    pos = lane % hw                    # per-image position -> no seam leakage
    hrow, wcol = pos // W, pos % W
    f_up = (hrow > 0).astype(np.float32)
    f_down = (hrow < H - 1).astype(np.float32)
    f_left = (wcol > 0).astype(np.float32)
    f_right = (wcol < W - 1).astype(np.float32)
    cnt = (f_up + 1.0 + f_down) * (f_left + 1.0 + f_right)
    return jnp.asarray(
        np.stack([f_up, f_down, f_left, f_right, 1.0 / cnt]).astype(np.float32))


def dw_inception(x_nchw, params, *, grid_blocks=None):
    """x_nchw: (N, in_dim, H, W) f32; params: PyTorch-layout conv weights."""
    N, Cin, H, W = x_nchw.shape
    HW = H * W

    if grid_blocks is None:
        grid_blocks = _default_grid_blocks(N)
    assert N % grid_blocks == 0
    ipb = N // grid_blocks             # images folded onto the lane axis
    L = ipb * HW

    (w_b0, w_b1_0, w_b1_1, w_b1_2,
     w_b2_0, w_b2_1, w_b2_2, w_b2_3, w_b2_4, w_b3_1) = params

    C4 = w_b0.shape[0]        # out_dim // 4
    C6 = w_b1_0.shape[0]      # out_dim // 6
    Cout = 4 * C4

    def as_1x1(w):            # (Cout, Cin, 1, 1) -> (Cout, Cin)
        return w[:, :, 0, 0]

    def as_dw(w):             # (C, 1, 3, 3) -> (9, C, 1), tap-major (ky*3+kx)
        c = w.shape[0]
        return jnp.transpose(w[:, 0], (1, 2, 0)).reshape(9, c, 1)

    # Fused 1x1 weight, row order [branch1-in | branch2-in | pool-in | branch0]
    # so all hot slices in the kernel start on 8-sublane boundaries.
    w_first = jnp.concatenate(
        [as_1x1(w_b1_0), as_1x1(w_b2_0), as_1x1(w_b3_1), as_1x1(w_b0)], axis=0)
    # One tap-weight tensor for the fused dw+dw+avgpool sweep; the pool rows use
    # all-ones taps (count_include_pad divisor applied in-kernel via inv_cnt).
    w_dwpool = jnp.concatenate(
        [as_dw(w_b1_1), as_dw(w_b2_1), jnp.ones((9, C4, 1), jnp.float32)], axis=1)
    w_mid = jax.scipy.linalg.block_diag(as_1x1(w_b1_2), as_1x1(w_b2_2))
    w_dw2b = as_dw(w_b2_3)
    w_last = as_1x1(w_b2_4)

    # NCHW -> (grid_blocks, Cin, ipb*H*W): channels on sublanes, lane-dense
    # flat (image, h, w) axis.  ipb == 1 => pure reshape, no data movement.
    x = x_nchw.reshape(grid_blocks, ipb, Cin, HW)
    x = jnp.transpose(x, (0, 2, 1, 3)).reshape(grid_blocks, Cin, L)

    masks = _border_masks(ipb, H, W)       # (5, L) f32, host precomputed

    kernel = functools.partial(_dw_inception_kernel, W=W)

    def full(shape):
        return pl.BlockSpec(shape, lambda b: (0,) * len(shape))

    gelu_rows = 6 * C4 + 4 * C6
    mm_flops = 2 * ((2 * C4 + 2 * C6) * Cin + (2 * C4) * (2 * C6) + C4 * C4)
    sweep_flops = 21 * (2 * C6 + 2 * C4) + 2 * C4     # per lane
    ew_flops = 15 * gelu_rows
    cost = pl.CostEstimate(
        flops=int(N * HW * (mm_flops + sweep_flops + ew_flops)),
        transcendentals=int(2 * N * HW * gelu_rows),
        bytes_accessed=int(4 * N * HW * (Cin + Cout)))

    out = pl.pallas_call(
        kernel,
        out_shape=jax.ShapeDtypeStruct((grid_blocks, Cout, L), x_nchw.dtype),
        grid=(grid_blocks,),
        in_specs=[
            pl.BlockSpec((1, Cin, L), lambda b: (b, 0, 0)),
            full(masks.shape), full(w_first.shape), full(w_dwpool.shape),
            full(w_mid.shape), full(w_dw2b.shape), full(w_last.shape),
        ],
        out_specs=pl.BlockSpec((1, Cout, L), lambda b: (b, 0, 0)),
        compiler_params=pltpu.CompilerParams(
            dimension_semantics=("parallel",)),
        cost_estimate=cost,
    )(x, masks, w_first, w_dwpool, w_mid, w_dw2b, w_last)

    out = out.reshape(grid_blocks, Cout, ipb, HW)
    out = jnp.transpose(out, (0, 2, 1, 3)).reshape(N, Cout, H, W)
    return out


def reference(x_nchw, params):
    """Pure-JAX NCHW reference mirroring the PyTorch module semantics."""
    (w_b0, w_b1_0, w_b1_1, w_b1_2,
     w_b2_0, w_b2_1, w_b2_2, w_b2_3, w_b2_4, w_b3_1) = params
    hi = jax.lax.Precision.HIGHEST

    def gelu(z):
        return jax.nn.gelu(z, approximate=False)

    def conv1x1(z, w):
        return jnp.einsum('nchw,oc->nohw', z, w[:, :, 0, 0], precision=hi)

    def dwconv3x3(z, w):
        return jax.lax.conv_general_dilated(
            z, w, window_strides=(1, 1), padding=((1, 1), (1, 1)),
            feature_group_count=z.shape[1],
            dimension_numbers=('NCHW', 'OIHW', 'NCHW'), precision=hi)

    def avgpool3x3(z):  # count_include_pad=False
        s = jax.lax.reduce_window(z, 0.0, jax.lax.add, (1, 1, 3, 3),
                                  (1, 1, 1, 1),
                                  ((0, 0), (0, 0), (1, 1), (1, 1)))
        c = jax.lax.reduce_window(jnp.ones_like(z), 0.0, jax.lax.add,
                                  (1, 1, 3, 3), (1, 1, 1, 1),
                                  ((0, 0), (0, 0), (1, 1), (1, 1)))
        return s / c

    x0 = gelu(conv1x1(x_nchw, w_b0))
    t = gelu(conv1x1(x_nchw, w_b1_0))
    t = gelu(dwconv3x3(t, w_b1_1))
    x1 = gelu(conv1x1(t, w_b1_2))
    u = gelu(conv1x1(x_nchw, w_b2_0))
    u = gelu(dwconv3x3(u, w_b2_1))
    u = gelu(conv1x1(u, w_b2_2))
    u = gelu(dwconv3x3(u, w_b2_3))
    x2 = gelu(conv1x1(u, w_b2_4))
    x3 = gelu(conv1x1(avgpool3x3(x_nchw), w_b3_1))
    return jnp.concatenate([x0, x1, x2, x3], axis=1)


if __name__ == "__main__":
    key = jax.random.PRNGKey(0)
    N, H, W = 2, 16, 16
    in_dim, out_dim = 16, 24          # out_dim//4 = 6, out_dim//6 = 4
    C4, C6 = out_dim // 4, out_dim // 6

    ks = jax.random.split(key, 11)
    x = jax.random.normal(ks[0], (N, in_dim, H, W), jnp.float32)

    def mk(k, o, i, kh, kw):          # PyTorch-layout conv weight, deterministic
        return jax.random.normal(k, (o, i, kh, kw), jnp.float32) * 0.2

    params = (
        mk(ks[1], C4, in_dim, 1, 1),   # branch0 conv1x1
        mk(ks[2], C6, in_dim, 1, 1),   # branch1 conv1x1
        mk(ks[3], C6, 1, 3, 3),        # branch1 dwconv3x3 (groups=C6)
        mk(ks[4], C4, C6, 1, 1),       # branch1 conv1x1
        mk(ks[5], C6, in_dim, 1, 1),   # branch2 conv1x1
        mk(ks[6], C6, 1, 3, 3),        # branch2 dwconv3x3 (groups=C6)
        mk(ks[7], C4, C6, 1, 1),       # branch2 conv1x1
        mk(ks[8], C4, 1, 3, 3),        # branch2 dwconv3x3 (groups=C4)
        mk(ks[9], C4, C4, 1, 1),       # branch2 conv1x1
        mk(ks[10], C4, in_dim, 1, 1),  # branch3 conv1x1 (after avgpool)
    )

    ref = reference(x, params)

    # Exercise both batch mappings: 2-step parallel grid (v7x, one image/step)
    # and fully batch-folded single step (v5e/v6e, batch on the lane axis).
    for gb in (2, 1):
        out = jax.block_until_ready(dw_inception(x, params, grid_blocks=gb))
        assert out.shape == (N, out_dim, H, W)
        err = float(jnp.max(jnp.abs(out - ref)))
        assert jnp.allclose(out, ref, atol=5e-3, rtol=5e-3), (
            "grid_blocks=%d mismatch vs reference, max|diff|=%e" % (gb, err))

    print("KERNEL_OK")
</pallas_src>

<mosaic_0001>
module attributes {stable_mosaic.version = 11 : i64} {
  func.func @_dw_inception_kernel(%arg0: i32, %arg1: memref<1x16x256xf32, #tpu.memory_space<vmem>>, %arg2: memref<5x256xf32, #tpu.memory_space<vmem>>, %arg3: memref<20x16xf32, #tpu.memory_space<vmem>>, %arg4: memref<9x14x1xf32, #tpu.memory_space<vmem>>, %arg5: memref<12x8xf32, #tpu.memory_space<vmem>>, %arg6: memref<9x6x1xf32, #tpu.memory_space<vmem>>, %arg7: memref<6x6xf32, #tpu.memory_space<vmem>>, %arg8: memref<1x24x256xf32, #tpu.memory_space<vmem>>) attributes {dimension_semantics = [#tpu.dimension_semantics<parallel>], iteration_bounds = array<i64: 2>, scalar_prefetch = 0 : i64, scratch_operands = 0 : i64, tpu.core_type = #tpu.core_type<tc>, window_params = [{transform_indices = @transform_0, window_bounds = array<i64: 1, 16, 256>}, {pipeline_mode = #tpu.pipeline_mode<synchronous>, transform_indices = @transform_1, window_bounds = array<i64: 5, 256>}, {pipeline_mode = #tpu.pipeline_mode<synchronous>, transform_indices = @transform_2, window_bounds = array<i64: 20, 16>}, {pipeline_mode = #tpu.pipeline_mode<synchronous>, transform_indices = @transform_3, window_bounds = array<i64: 9, 14, 1>}, {pipeline_mode = #tpu.pipeline_mode<synchronous>, transform_indices = @transform_4, window_bounds = array<i64: 12, 8>}, {pipeline_mode = #tpu.pipeline_mode<synchronous>, transform_indices = @transform_5, window_bounds = array<i64: 9, 6, 1>}, {pipeline_mode = #tpu.pipeline_mode<synchronous>, transform_indices = @transform_6, window_bounds = array<i64: 6, 6>}, {transform_indices = @transform_7, window_bounds = array<i64: 1, 24, 256>}]} {
    %c0 = arith.constant 0 : index
    %c0_0 = arith.constant 0 : index
    %c0_1 = arith.constant 0 : index
    %0 = vector.load %arg1[%c0, %c0_0, %c0_1] : memref<1x16x256xf32, #tpu.memory_space<vmem>>, vector<1x16x256xf32>
    %1 = vector.shape_cast %0 : vector<1x16x256xf32> to vector<16x256xf32>
    %c0_2 = arith.constant 0 : index
    %c0_3 = arith.constant 0 : index
    %2 = vector.load %arg2[%c0_2, %c0_3] : memref<5x256xf32, #tpu.memory_space<vmem>>, vector<5x256xf32>
    %3 = vector.extract_strided_slice %2 {offsets = [0, 0], sizes = [1, 256], strides = [1, 1]} : vector<5x256xf32> to vector<1x256xf32>
    %4 = vector.extract_strided_slice %2 {offsets = [1, 0], sizes = [1, 256], strides = [1, 1]} : vector<5x256xf32> to vector<1x256xf32>
    %5 = vector.extract_strided_slice %2 {offsets = [2, 0], sizes = [1, 256], strides = [1, 1]} : vector<5x256xf32> to vector<1x256xf32>
    %6 = vector.extract_strided_slice %2 {offsets = [3, 0], sizes = [1, 256], strides = [1, 1]} : vector<5x256xf32> to vector<1x256xf32>
    %7 = vector.extract_strided_slice %2 {offsets = [4, 0], sizes = [1, 256], strides = [1, 1]} : vector<5x256xf32> to vector<1x256xf32>
    %c0_4 = arith.constant 0 : index
    %c0_5 = arith.constant 0 : index
    %8 = vector.load %arg3[%c0_4, %c0_5] : memref<20x16xf32, #tpu.memory_space<vmem>>, vector<20x16xf32>
    %cst = arith.constant dense<0.000000e+00> : vector<20x256xf32>
    %9 = tpu.matmul %8, %1, %cst {dimension_numbers = #tpu.dot_dimension_numbers<[1], [0], [0], [1], [0, 0, 1, 1], [], []>} : vector<20x16xf32>, vector<16x256xf32>, vector<20x256xf32> -> vector<20x256xf32>
    %10 = vector.extract_strided_slice %9 {offsets = [14, 0], sizes = [6, 256], strides = [1, 1]} : vector<20x256xf32> to vector<6x256xf32>
    %cst_6 = arith.constant 5.000000e-01 : f32
    %11 = vector.broadcast %cst_6 : f32 to vector<6x256xf32>
    %12 = arith.mulf %11, %10 : vector<6x256xf32>
    %cst_7 = arith.constant 0.707106769 : f32
    %13 = vector.broadcast %cst_7 : f32 to vector<6x256xf32>
    %14 = arith.mulf %10, %13 : vector<6x256xf32>
    %15 = math.absf %14 : vector<6x256xf32>
    %cst_8 = arith.constant 0.327591091 : f32
    %16 = vector.broadcast %cst_8 : f32 to vector<6x256xf32>
    %17 = arith.mulf %16, %15 : vector<6x256xf32>
    %cst_9 = arith.constant 1.000000e+00 : f32
    %18 = vector.broadcast %cst_9 : f32 to vector<6x256xf32>
    %19 = arith.addf %18, %17 : vector<6x256xf32>
    %20 = tpu.reciprocal %19 {approx = true} : vector<6x256xf32> -> vector<6x256xf32>
    %cst_10 = arith.constant 1.06140542 : f32
    %21 = vector.broadcast %cst_10 : f32 to vector<6x256xf32>
    %22 = arith.mulf %20, %21 : vector<6x256xf32>
    %cst_11 = arith.constant -1.45315206 : f32
    %23 = vector.broadcast %cst_11 : f32 to vector<6x256xf32>
    %24 = arith.addf %23, %22 : vector<6x256xf32>
    %25 = arith.mulf %20, %24 : vector<6x256xf32>
    %cst_12 = arith.constant 1.42141378 : f32
    %26 = vector.broadcast %cst_12 : f32 to vector<6x256xf32>
    %27 = arith.addf %26, %25 : vector<6x256xf32>
    %28 = arith.mulf %20, %27 : vector<6x256xf32>
    %cst_13 = arith.constant -0.284496725 : f32
    %29 = vector.broadcast %cst_13 : f32 to vector<6x256xf32>
    %30 = arith.addf %29, %28 : vector<6x256xf32>
    %31 = arith.mulf %20, %30 : vector<6x256xf32>
    %cst_14 = arith.constant 0.254829586 : f32
    %32 = vector.broadcast %cst_14 : f32 to vector<6x256xf32>
    %33 = arith.addf %32, %31 : vector<6x256xf32>
    %34 = arith.mulf %20, %33 : vector<6x256xf32>
    %cst_15 = arith.constant 0.000000e+00 : f32
    %35 = vector.broadcast %cst_15 : f32 to vector<6x256xf32>
    %36 = arith.subf %35, %15 : vector<6x256xf32>
    %37 = arith.mulf %36, %15 : vector<6x256xf32>
    %38 = math.exp %37 : vector<6x256xf32>
    %39 = arith.mulf %34, %38 : vector<6x256xf32>
    %cst_16 = arith.constant 1.000000e+00 : f32
    %40 = vector.broadcast %cst_16 : f32 to vector<6x256xf32>
    %41 = arith.subf %40, %39 : vector<6x256xf32>
    %cst_17 = arith.constant 0.000000e+00 : f32
    %42 = vector.broadcast %cst_17 : f32 to vector<6x256xf32>
    %43 = arith.cmpf oge, %14, %42 : vector<6x256xf32>
    %cst_18 = arith.constant 0.000000e+00 : f32
    %44 = vector.broadcast %cst_18 : f32 to vector<6x256xf32>
    %45 = arith.subf %44, %41 : vector<6x256xf32>
    %46 = arith.select %43, %41, %45 : vector<6x256xi1>, vector<6x256xf32>
    %cst_19 = arith.constant 1.000000e+00 : f32
    %47 = vector.broadcast %cst_19 : f32 to vector<6x256xf32>
    %48 = arith.addf %47, %46 : vector<6x256xf32>
    %49 = arith.mulf %12, %48 : vector<6x256xf32>
    %c0_20 = arith.constant 0 : index
    %c0_21 = arith.constant 0 : index
    %c0_22 = arith.constant 0 : index
    %50 = vector.load %arg8[%c0_20, %c0_21, %c0_22] : memref<1x24x256xf32, #tpu.memory_space<vmem>>, vector<1x6x256xf32>
    %51 = vector.shape_cast %50 : vector<1x6x256xf32> to vector<6x256xf32>
    %52 = vector.shape_cast %49 : vector<6x256xf32> to vector<1x6x256xf32>
    tpu.vector_store %arg8[%c0_20, %c0_21, %c0_22], %52 {strides = array<i32>} : memref<1x24x256xf32, #tpu.memory_space<vmem>>, vector<1x6x256xf32>,
    %53 = vector.extract_strided_slice %9 {offsets = [0, 0], sizes = [8, 256], strides = [1, 1]} : vector<20x256xf32> to vector<8x256xf32>
    %cst_23 = arith.constant 5.000000e-01 : f32
    %54 = vector.broadcast %cst_23 : f32 to vector<8x256xf32>
    %55 = arith.mulf %54, %53 : vector<8x256xf32>
    %cst_24 = arith.constant 0.707106769 : f32
    %56 = vector.broadcast %cst_24 : f32 to vector<8x256xf32>
    %57 = arith.mulf %53, %56 : vector<8x256xf32>
    %58 = math.absf %57 : vector<8x256xf32>
    %cst_25 = arith.constant 0.327591091 : f32
    %59 = vector.broadcast %cst_25 : f32 to vector<8x256xf32>
    %60 = arith.mulf %59, %58 : vector<8x256xf32>
    %cst_26 = arith.constant 1.000000e+00 : f32
    %61 = vector.broadcast %cst_26 : f32 to vector<8x256xf32>
    %62 = arith.addf %61, %60 : vector<8x256xf32>
    %63 = tpu.reciprocal %62 {approx = true} : vector<8x256xf32> -> vector<8x256xf32>
    %cst_27 = arith.constant 1.06140542 : f32
    %64 = vector.broadcast %cst_27 : f32 to vector<8x256xf32>
    %65 = arith.mulf %63, %64 : vector<8x256xf32>
    %cst_28 = arith.constant -1.45315206 : f32
    %66 = vector.broadcast %cst_28 : f32 to vector<8x256xf32>
    %67 = arith.addf %66, %65 : vector<8x256xf32>
    %68 = arith.mulf %63, %67 : vector<8x256xf32>
    %cst_29 = arith.constant 1.42141378 : f32
    %69 = vector.broadcast %cst_29 : f32 to vector<8x256xf32>
    %70 = arith.addf %69, %68 : vector<8x256xf32>
    %71 = arith.mulf %63, %70 : vector<8x256xf32>
    %cst_30 = arith.constant -0.284496725 : f32
    %72 = vector.broadcast %cst_30 : f32 to vector<8x256xf32>
    %73 = arith.addf %72, %71 : vector<8x256xf32>
    %74 = arith.mulf %63, %73 : vector<8x256xf32>
    %cst_31 = arith.constant 0.254829586 : f32
    %75 = vector.broadcast %cst_31 : f32 to vector<8x256xf32>
    %76 = arith.addf %75, %74 : vector<8x256xf32>
    %77 = arith.mulf %63, %76 : vector<8x256xf32>
    %cst_32 = arith.constant 0.000000e+00 : f32
    %78 = vector.broadcast %cst_32 : f32 to vector<8x256xf32>
    %79 = arith.subf %78, %58 : vector<8x256xf32>
    %80 = arith.mulf %79, %58 : vector<8x256xf32>
    %81 = math.exp %80 : vector<8x256xf32>
    %82 = arith.mulf %77, %81 : vector<8x256xf32>
    %cst_33 = arith.constant 1.000000e+00 : f32
    %83 = vector.broadcast %cst_33 : f32 to vector<8x256xf32>
    %84 = arith.subf %83, %82 : vector<8x256xf32>
    %cst_34 = arith.constant 0.000000e+00 : f32
    %85 = vector.broadcast %cst_34 : f32 to vector<8x256xf32>
    %86 = arith.cmpf oge, %57, %85 : vector<8x256xf32>
    %cst_35 = arith.constant 0.000000e+00 : f32
    %87 = vector.broadcast %cst_35 : f32 to vector<8x256xf32>
    %88 = arith.subf %87, %84 : vector<8x256xf32>
    %89 = arith.select %86, %84, %88 : vector<8x256xi1>, vector<8x256xf32>
    %cst_36 = arith.constant 1.000000e+00 : f32
    %90 = vector.broadcast %cst_36 : f32 to vector<8x256xf32>
    %91 = arith.addf %90, %89 : vector<8x256xf32>
    %92 = arith.mulf %55, %91 : vector<8x256xf32>
    %93 = vector.extract_strided_slice %9 {offsets = [8, 0], sizes = [6, 256], strides = [1, 1]} : vector<20x256xf32> to vector<6x256xf32>
    %94 = tpu.concatenate %92, %93 in 0 : vector<8x256xf32>, vector<6x256xf32> -> vector<14x256xf32>
    %c0_37 = arith.constant 0 : index
    %c0_38 = arith.constant 0 : index
    %c0_39 = arith.constant 0 : index
    %95 = vector.load %arg4[%c0_37, %c0_38, %c0_39] : memref<9x14x1xf32, #tpu.memory_space<vmem>>, vector<9x14x1xf32>
    %c16_i32 = arith.constant 16 : i32
    %96 = tpu.dynamic_rotate %94 by %c16_i32 dim 1 : vector<14x256xf32>, i32 -> vector<14x256xf32>
    %97 = vector.broadcast %3 : vector<1x256xf32> to vector<14x256xf32>
    %98 = arith.mulf %96, %97 : vector<14x256xf32>
    %c240_i32 = arith.constant 240 : i32
    %99 = tpu.dynamic_rotate %94 by %c240_i32 dim 1 : vector<14x256xf32>, i32 -> vector<14x256xf32>
    %100 = vector.broadcast %4 : vector<1x256xf32> to vector<14x256xf32>
    %101 = arith.mulf %99, %100 : vector<14x256xf32>
    %102 = vector.extract_strided_slice %95 {offsets = [0, 0, 0], sizes = [1, 14, 1], strides = [1, 1, 1]} : vector<9x14x1xf32> to vector<1x14x1xf32>
    %103 = vector.shape_cast %102 : vector<1x14x1xf32> to vector<14x1xf32>
    %104 = vector.broadcast %103 : vector<14x1xf32> to vector<14x256xf32>
    %105 = arith.mulf %104, %98 : vector<14x256xf32>
    %106 = vector.extract_strided_slice %95 {offsets = [3, 0, 0], sizes = [1, 14, 1], strides = [1, 1, 1]} : vector<9x14x1xf32> to vector<1x14x1xf32>
    %107 = vector.shape_cast %106 : vector<1x14x1xf32> to vector<14x1xf32>
    %108 = vector.broadcast %107 : vector<14x1xf32> to vector<14x256xf32>
    %109 = arith.mulf %108, %94 : vector<14x256xf32>
    %110 = arith.addf %105, %109 : vector<14x256xf32>
    %111 = vector.extract_strided_slice %95 {offsets = [6, 0, 0], sizes = [1, 14, 1], strides = [1, 1, 1]} : vector<9x14x1xf32> to vector<1x14x1xf32>
    %112 = vector.shape_cast %111 : vector<1x14x1xf32> to vector<14x1xf32>
    %113 = vector.broadcast %112 : vector<14x1xf32> to vector<14x256xf32>
    %114 = arith.mulf %113, %101 : vector<14x256xf32>
    %115 = arith.addf %110, %114 : vector<14x256xf32>
    %116 = vector.extract_strided_slice %95 {offsets = [1, 0, 0], sizes = [1, 14, 1], strides = [1, 1, 1]} : vector<9x14x1xf32> to vector<1x14x1xf32>
    %117 = vector.shape_cast %116 : vector<1x14x1xf32> to vector<14x1xf32>
    %118 = vector.broadcast %117 : vector<14x1xf32> to vector<14x256xf32>
    %119 = arith.mulf %118, %98 : vector<14x256xf32>
    %120 = vector.extract_strided_slice %95 {offsets = [4, 0, 0], sizes = [1, 14, 1], strides = [1, 1, 1]} : vector<9x14x1xf32> to vector<1x14x1xf32>
    %121 = vector.shape_cast %120 : vector<1x14x1xf32> to vector<14x1xf32>
    %122 = vector.broadcast %121 : vector<14x1xf32> to vector<14x256xf32>
    %123 = arith.mulf %122, %94 : vector<14x256xf32>
    %124 = arith.addf %119, %123 : vector<14x256xf32>
    %125 = vector.extract_strided_slice %95 {offsets = [7, 0, 0], sizes = [1, 14, 1], strides = [1, 1, 1]} : vector<9x14x1xf32> to vector<1x14x1xf32>
    %126 = vector.shape_cast %125 : vector<1x14x1xf32> to vector<14x1xf32>
    %127 = vector.broadcast %126 : vector<14x1xf32> to vector<14x256xf32>
    %128 = arith.mulf %127, %101 : vector<14x256xf32>
    %129 = arith.addf %124, %128 : vector<14x256xf32>
    %130 = vector.extract_strided_slice %95 {offsets = [2, 0, 0], sizes = [1, 14, 1], strides = [1, 1, 1]} : vector<9x14x1xf32> to vector<1x14x1xf32>
    %131 = vector.shape_cast %130 : vector<1x14x1xf32> to vector<14x1xf32>
    %132 = vector.broadcast %131 : vector<14x1xf32> to vector<14x256xf32>
    %133 = arith.mulf %132, %98 : vector<14x256xf32>
    %134 = vector.extract_strided_slice %95 {offsets = [5, 0, 0], sizes = [1, 14, 1], strides = [1, 1, 1]} : vector<9x14x1xf32> to vector<1x14x1xf32>
    %135 = vector.shape_cast %134 : vector<1x14x1xf32> to vector<14x1xf32>
    %136 = vector.broadcast %135 : vector<14x1xf32> to vector<14x256xf32>
    %137 = arith.mulf %136, %94 : vector<14x256xf32>
    %138 = arith.addf %133, %137 : vector<14x256xf32>
    %139 = vector.extract_strided_slice %95 {offsets = [8, 0, 0], sizes = [1, 14, 1], strides = [1, 1, 1]} : vector<9x14x1xf32> to vector<1x14x1xf32>
    %140 = vector.shape_cast %139 : vector<1x14x1xf32> to vector<14x1xf32>
    %141 = vector.broadcast %140 : vector<14x1xf32> to vector<14x256xf32>
    %142 = arith.mulf %141, %101 : vector<14x256xf32>
    %143 = arith.addf %138, %142 : vector<14x256xf32>
    %c1_i32 = arith.constant 1 : i32
    %144 = tpu.dynamic_rotate %115 by %c1_i32 dim 1 : vector<14x256xf32>, i32 -> vector<14x256xf32>
    %145 = vector.broadcast %5 : vector<1x256xf32> to vector<14x256xf32>
    %146 = arith.mulf %144, %145 : vector<14x256xf32>
    %147 = arith.addf %146, %129 : vector<14x256xf32>
    %c255_i32 = arith.constant 255 : i32
    %148 = tpu.dynamic_rotate %143 by %c255_i32 dim 1 : vector<14x256xf32>, i32 -> vector<14x256xf32>
    %149 = vector.broadcast %6 : vector<1x256xf32> to vector<14x256xf32>
    %150 = arith.mulf %148, %149 : vector<14x256xf32>
    %151 = arith.addf %147, %150 : vector<14x256xf32>
    %152 = vector.extract_strided_slice %151 {offsets = [8, 0], sizes = [6, 256], strides = [1, 1]} : vector<14x256xf32> to vector<6x256xf32>
    %153 = vector.broadcast %7 : vector<1x256xf32> to vector<6x256xf32>
    %154 = arith.mulf %152, %153 : vector<6x256xf32>
    %cst_40 = arith.constant 5.000000e-01 : f32
    %155 = vector.broadcast %cst_40 : f32 to vector<6x256xf32>
    %156 = arith.mulf %155, %154 : vector<6x256xf32>
    %cst_41 = arith.constant 0.707106769 : f32
    %157 = vector.broadcast %cst_41 : f32 to vector<6x256xf32>
    %158 = arith.mulf %154, %157 : vector<6x256xf32>
    %159 = math.absf %158 : vector<6x256xf32>
    %cst_42 = arith.constant 0.327591091 : f32
    %160 = vector.broadcast %cst_42 : f32 to vector<6x256xf32>
    %161 = arith.mulf %160, %159 : vector<6x256xf32>
    %cst_43 = arith.constant 1.000000e+00 : f32
    %162 = vector.broadcast %cst_43 : f32 to vector<6x256xf32>
    %163 = arith.addf %162, %161 : vector<6x256xf32>
    %164 = tpu.reciprocal %163 {approx = true} : vector<6x256xf32> -> vector<6x256xf32>
    %cst_44 = arith.constant 1.06140542 : f32
    %165 = vector.broadcast %cst_44 : f32 to vector<6x256xf32>
    %166 = arith.mulf %164, %165 : vector<6x256xf32>
    %cst_45 = arith.constant -1.45315206 : f32
    %167 = vector.broadcast %cst_45 : f32 to vector<6x256xf32>
    %168 = arith.addf %167, %166 : vector<6x256xf32>
    %169 = arith.mulf %164, %168 : vector<6x256xf32>
    %cst_46 = arith.constant 1.42141378 : f32
    %170 = vector.broadcast %cst_46 : f32 to vector<6x256xf32>
    %171 = arith.addf %170, %169 : vector<6x256xf32>
    %172 = arith.mulf %164, %171 : vector<6x256xf32>
    %cst_47 = arith.constant -0.284496725 : f32
    %173 = vector.broadcast %cst_47 : f32 to vector<6x256xf32>
    %174 = arith.addf %173, %172 : vector<6x256xf32>
    %175 = arith.mulf %164, %174 : vector<6x256xf32>
    %cst_48 = arith.constant 0.254829586 : f32
    %176 = vector.broadcast %cst_48 : f32 to vector<6x256xf32>
    %177 = arith.addf %176, %175 : vector<6x256xf32>
    %178 = arith.mulf %164, %177 : vector<6x256xf32>
    %cst_49 = arith.constant 0.000000e+00 : f32
    %179 = vector.broadcast %cst_49 : f32 to vector<6x256xf32>
    %180 = arith.subf %179, %159 : vector<6x256xf32>
    %181 = arith.mulf %180, %159 : vector<6x256xf32>
    %182 = math.exp %181 : vector<6x256xf32>
    %183 = arith.mulf %178, %182 : vector<6x256xf32>
    %cst_50 = arith.constant 1.000000e+00 : f32
    %184 = vector.broadcast %cst_50 : f32 to vector<6x256xf32>
    %185 = arith.subf %184, %183 : vector<6x256xf32>
    %cst_51 = arith.constant 0.000000e+00 : f32
    %186 = vector.broadcast %cst_51 : f32 to vector<6x256xf32>
    %187 = arith.cmpf oge, %158, %186 : vector<6x256xf32>
    %cst_52 = arith.constant 0.000000e+00 : f32
    %188 = vector.broadcast %cst_52 : f32 to vector<6x256xf32>
    %189 = arith.subf %188, %185 : vector<6x256xf32>
    %190 = arith.select %187, %185, %189 : vector<6x256xi1>, vector<6x256xf32>
    %cst_53 = arith.constant 1.000000e+00 : f32
    %191 = vector.broadcast %cst_53 : f32 to vector<6x256xf32>
    %192 = arith.addf %191, %190 : vector<6x256xf32>
    %193 = arith.mulf %156, %192 : vector<6x256xf32>
    %c0_54 = arith.constant 0 : index
    %c18 = arith.constant 18 : index
    %c0_55 = arith.constant 0 : index
    %194 = vector.load %arg8[%c0_54, %c18, %c0_55] : memref<1x24x256xf32, #tpu.memory_space<vmem>>, vector<1x6x256xf32>
    %195 = vector.shape_cast %194 : vector<1x6x256xf32> to vector<6x256xf32>
    %196 = vector.shape_cast %193 : vector<6x256xf32> to vector<1x6x256xf32>
    tpu.vector_store %arg8[%c0_54, %c18, %c0_55], %196 {strides = array<i32>} : memref<1x24x256xf32, #tpu.memory_space<vmem>>, vector<1x6x256xf32>,
    %197 = vector.extract_strided_slice %151 {offsets = [0, 0], sizes = [8, 256], strides = [1, 1]} : vector<14x256xf32> to vector<8x256xf32>
    %cst_56 = arith.constant 5.000000e-01 : f32
    %198 = vector.broadcast %cst_56 : f32 to vector<8x256xf32>
    %199 = arith.mulf %198, %197 : vector<8x256xf32>
    %cst_57 = arith.constant 0.707106769 : f32
    %200 = vector.broadcast %cst_57 : f32 to vector<8x256xf32>
    %201 = arith.mulf %197, %200 : vector<8x256xf32>
    %202 = math.absf %201 : vector<8x256xf32>
    %cst_58 = arith.constant 0.327591091 : f32
    %203 = vector.broadcast %cst_58 : f32 to vector<8x256xf32>
    %204 = arith.mulf %203, %202 : vector<8x256xf32>
    %cst_59 = arith.constant 1.000000e+00 : f32
    %205 = vector.broadcast %cst_59 : f32 to vector<8x256xf32>
    %206 = arith.addf %205, %204 : vector<8x256xf32>
    %207 = tpu.reciprocal %206 {approx = true} : vector<8x256xf32> -> vector<8x256xf32>
    %cst_60 = arith.constant 1.06140542 : f32
    %208 = vector.broadcast %cst_60 : f32 to vector<8x256xf32>
    %209 = arith.mulf %207, %208 : vector<8x256xf32>
    %cst_61 = arith.constant -1.45315206 : f32
    %210 = vector.broadcast %cst_61 : f32 to vector<8x256xf32>
    %211 = arith.addf %210, %209 : vector<8x256xf32>
    %212 = arith.mulf %207, %211 : vector<8x256xf32>
    %cst_62 = arith.constant 1.42141378 : f32
    %213 = vector.broadcast %cst_62 : f32 to vector<8x256xf32>
    %214 = arith.addf %213, %212 : vector<8x256xf32>
    %215 = arith.mulf %207, %214 : vector<8x256xf32>
    %cst_63 = arith.constant -0.284496725 : f32
    %216 = vector.broadcast %cst_63 : f32 to vector<8x256xf32>
    %217 = arith.addf %216, %215 : vector<8x256xf32>
    %218 = arith.mulf %207, %217 : vector<8x256xf32>
    %cst_64 = arith.constant 0.254829586 : f32
    %219 = vector.broadcast %cst_64 : f32 to vector<8x256xf32>
    %220 = arith.addf %219, %218 : vector<8x256xf32>
    %221 = arith.mulf %207, %220 : vector<8x256xf32>
    %cst_65 = arith.constant 0.000000e+00 : f32
    %222 = vector.broadcast %cst_65 : f32 to vector<8x256xf32>
    %223 = arith.subf %222, %202 : vector<8x256xf32>
    %224 = arith.mulf %223, %202 : vector<8x256xf32>
    %225 = math.exp %224 : vector<8x256xf32>
    %226 = arith.mulf %221, %225 : vector<8x256xf32>
    %cst_66 = arith.constant 1.000000e+00 : f32
    %227 = vector.broadcast %cst_66 : f32 to vector<8x256xf32>
    %228 = arith.subf %227, %226 : vector<8x256xf32>
    %cst_67 = arith.constant 0.000000e+00 : f32
    %229 = vector.broadcast %cst_67 : f32 to vector<8x256xf32>
    %230 = arith.cmpf oge, %201, %229 : vector<8x256xf32>
    %cst_68 = arith.constant 0.000000e+00 : f32
    %231 = vector.broadcast %cst_68 : f32 to vector<8x256xf32>
    %232 = arith.subf %231, %228 : vector<8x256xf32>
    %233 = arith.select %230, %228, %232 : vector<8x256xi1>, vector<8x256xf32>
    %cst_69 = arith.constant 1.000000e+00 : f32
    %234 = vector.broadcast %cst_69 : f32 to vector<8x256xf32>
    %235 = arith.addf %234, %233 : vector<8x256xf32>
    %236 = arith.mulf %199, %235 : vector<8x256xf32>
    %c0_70 = arith.constant 0 : index
    %c0_71 = arith.constant 0 : index
    %237 = vector.load %arg5[%c0_70, %c0_71] : memref<12x8xf32, #tpu.memory_space<vmem>>, vector<12x8xf32>
    %cst_72 = arith.constant dense<0.000000e+00> : vector<12x256xf32>
    %238 = tpu.matmul %237, %236, %cst_72 {dimension_numbers = #tpu.dot_dimension_numbers<[1], [0], [0], [1], [0, 0, 1, 1], [], []>} : vector<12x8xf32>, vector<8x256xf32>, vector<12x256xf32> -> vector<12x256xf32>
    %cst_73 = arith.constant 5.000000e-01 : f32
    %239 = vector.broadcast %cst_73 : f32 to vector<12x256xf32>
    %240 = arith.mulf %239, %238 : vector<12x256xf32>
    %cst_74 = arith.constant 0.707106769 : f32
    %241 = vector.broadcast %cst_74 : f32 to vector<12x256xf32>
    %242 = arith.mulf %238, %241 : vector<12x256xf32>
    %243 = math.absf %242 : vector<12x256xf32>
    %cst_75 = arith.constant 0.327591091 : f32
    %244 = vector.broadcast %cst_75 : f32 to vector<12x256xf32>
    %245 = arith.mulf %244, %243 : vector<12x256xf32>
    %cst_76 = arith.constant 1.000000e+00 : f32
    %246 = vector.broadcast %cst_76 : f32 to vector<12x256xf32>
    %247 = arith.addf %246, %245 : vector<12x256xf32>
    %248 = tpu.reciprocal %247 {approx = true} : vector<12x256xf32> -> vector<12x256xf32>
    %cst_77 = arith.constant 1.06140542 : f32
    %249 = vector.broadcast %cst_77 : f32 to vector<12x256xf32>
    %250 = arith.mulf %248, %249 : vector<12x256xf32>
    %cst_78 = arith.constant -1.45315206 : f32
    %251 = vector.broadcast %cst_78 : f32 to vector<12x256xf32>
    %252 = arith.addf %251, %250 : vector<12x256xf32>
    %253 = arith.mulf %248, %252 : vector<12x256xf32>
    %cst_79 = arith.constant 1.42141378 : f32
    %254 = vector.broadcast %cst_79 : f32 to vector<12x256xf32>
    %255 = arith.addf %254, %253 : vector<12x256xf32>
    %256 = arith.mulf %248, %255 : vector<12x256xf32>
    %cst_80 = arith.constant -0.284496725 : f32
    %257 = vector.broadcast %cst_80 : f32 to vector<12x256xf32>
    %258 = arith.addf %257, %256 : vector<12x256xf32>
    %259 = arith.mulf %248, %258 : vector<12x256xf32>
    %cst_81 = arith.constant 0.254829586 : f32
    %260 = vector.broadcast %cst_81 : f32 to vector<12x256xf32>
    %261 = arith.addf %260, %259 : vector<12x256xf32>
    %262 = arith.mulf %248, %261 : vector<12x256xf32>
    %cst_82 = arith.constant 0.000000e+00 : f32
    %263 = vector.broadcast %cst_82 : f32 to vector<12x256xf32>
    %264 = arith.subf %263, %243 : vector<12x256xf32>
    %265 = arith.mulf %264, %243 : vector<12x256xf32>
    %266 = math.exp %265 : vector<12x256xf32>
    %267 = arith.mulf %262, %266 : vector<12x256xf32>
    %cst_83 = arith.constant 1.000000e+00 : f32
    %268 = vector.broadcast %cst_83 : f32 to vector<12x256xf32>
    %269 = arith.subf %268, %267 : vector<12x256xf32>
    %cst_84 = arith.constant 0.000000e+00 : f32
    %270 = vector.broadcast %cst_84 : f32 to vector<12x256xf32>
    %271 = arith.cmpf oge, %242, %270 : vector<12x256xf32>
    %cst_85 = arith.constant 0.000000e+00 : f32
    %272 = vector.broadcast %cst_85 : f32 to vector<12x256xf32>
    %273 = arith.subf %272, %269 : vector<12x256xf32>
    %274 = arith.select %271, %269, %273 : vector<12x256xi1>, vector<12x256xf32>
    %cst_86 = arith.constant 1.000000e+00 : f32
    %275 = vector.broadcast %cst_86 : f32 to vector<12x256xf32>
    %276 = arith.addf %275, %274 : vector<12x256xf32>
    %277 = arith.mulf %240, %276 : vector<12x256xf32>
    %278 = vector.extract_strided_slice %277 {offsets = [0, 0], sizes = [6, 256], strides = [1, 1]} : vector<12x256xf32> to vector<6x256xf32>
    %c0_87 = arith.constant 0 : index
    %c6 = arith.constant 6 : index
    %c0_88 = arith.constant 0 : index
    %279 = vector.load %arg8[%c0_87, %c6, %c0_88] : memref<1x24x256xf32, #tpu.memory_space<vmem>>, vector<1x6x256xf32>
    %280 = vector.shape_cast %279 : vector<1x6x256xf32> to vector<6x256xf32>
    %281 = vector.shape_cast %278 : vector<6x256xf32> to vector<1x6x256xf32>
    tpu.vector_store %arg8[%c0_87, %c6, %c0_88], %281 {strides = array<i32>} : memref<1x24x256xf32, #tpu.memory_space<vmem>>, vector<1x6x256xf32>,
    %282 = vector.extract_strided_slice %277 {offsets = [6, 0], sizes = [6, 256], strides = [1, 1]} : vector<12x256xf32> to vector<6x256xf32>
    %c0_89 = arith.constant 0 : index
    %c0_90 = arith.constant 0 : index
    %c0_91 = arith.constant 0 : index
    %283 = vector.load %arg6[%c0_89, %c0_90, %c0_91] : memref<9x6x1xf32, #tpu.memory_space<vmem>>, vector<9x6x1xf32>
    %c16_i32_92 = arith.constant 16 : i32
    %284 = tpu.dynamic_rotate %282 by %c16_i32_92 dim 1 : vector<6x256xf32>, i32 -> vector<6x256xf32>
    %285 = vector.broadcast %3 : vector<1x256xf32> to vector<6x256xf32>
    %286 = arith.mulf %284, %285 : vector<6x256xf32>
    %c240_i32_93 = arith.constant 240 : i32
    %287 = tpu.dynamic_rotate %282 by %c240_i32_93 dim 1 : vector<6x256xf32>, i32 -> vector<6x256xf32>
    %288 = vector.broadcast %4 : vector<1x256xf32> to vector<6x256xf32>
    %289 = arith.mulf %287, %288 : vector<6x256xf32>
    %290 = vector.extract_strided_slice %283 {offsets = [0, 0, 0], sizes = [1, 6, 1], strides = [1, 1, 1]} : vector<9x6x1xf32> to vector<1x6x1xf32>
    %291 = vector.shape_cast %290 : vector<1x6x1xf32> to vector<6x1xf32>
    %292 = vector.broadcast %291 : vector<6x1xf32> to vector<6x256xf32>
    %293 = arith.mulf %292, %286 : vector<6x256xf32>
    %294 = vector.extract_strided_slice %283 {offsets = [3, 0, 0], sizes = [1, 6, 1], strides = [1, 1, 1]} : vector<9x6x1xf32> to vector<1x6x1xf32>
    %295 = vector.shape_cast %294 : vector<1x6x1xf32> to vector<6x1xf32>
    %296 = vector.broadcast %295 : vector<6x1xf32> to vector<6x256xf32>
    %297 = arith.mulf %296, %282 : vector<6x256xf32>
    %298 = arith.addf %293, %297 : vector<6x256xf32>
    %299 = vector.extract_strided_slice %283 {offsets = [6, 0, 0], sizes = [1, 6, 1], strides = [1, 1, 1]} : vector<9x6x1xf32> to vector<1x6x1xf32>
    %300 = vector.shape_cast %299 : vector<1x6x1xf32> to vector<6x1xf32>
    %301 = vector.broadcast %300 : vector<6x1xf32> to vector<6x256xf32>
    %302 = arith.mulf %301, %289 : vector<6x256xf32>
    %303 = arith.addf %298, %302 : vector<6x256xf32>
    %304 = vector.extract_strided_slice %283 {offsets = [1, 0, 0], sizes = [1, 6, 1], strides = [1, 1, 1]} : vector<9x6x1xf32> to vector<1x6x1xf32>
    %305 = vector.shape_cast %304 : vector<1x6x1xf32> to vector<6x1xf32>
    %306 = vector.broadcast %305 : vector<6x1xf32> to vector<6x256xf32>
    %307 = arith.mulf %306, %286 : vector<6x256xf32>
    %308 = vector.extract_strided_slice %283 {offsets = [4, 0, 0], sizes = [1, 6, 1], strides = [1, 1, 1]} : vector<9x6x1xf32> to vector<1x6x1xf32>
    %309 = vector.shape_cast %308 : vector<1x6x1xf32> to vector<6x1xf32>
    %310 = vector.broadcast %309 : vector<6x1xf32> to vector<6x256xf32>
    %311 = arith.mulf %310, %282 : vector<6x256xf32>
    %312 = arith.addf %307, %311 : vector<6x256xf32>
    %313 = vector.extract_strided_slice %283 {offsets = [7, 0, 0], sizes = [1, 6, 1], strides = [1, 1, 1]} : vector<9x6x1xf32> to vector<1x6x1xf32>
    %314 = vector.shape_cast %313 : vector<1x6x1xf32> to vector<6x1xf32>
    %315 = vector.broadcast %314 : vector<6x1xf32> to vector<6x256xf32>
    %316 = arith.mulf %315, %289 : vector<6x256xf32>
    %317 = arith.addf %312, %316 : vector<6x256xf32>
    %318 = vector.extract_strided_slice %283 {offsets = [2, 0, 0], sizes = [1, 6, 1], strides = [1, 1, 1]} : vector<9x6x1xf32> to vector<1x6x1xf32>
    %319 = vector.shape_cast %318 : vector<1x6x1xf32> to vector<6x1xf32>
    %320 = vector.broadcast %319 : vector<6x1xf32> to vector<6x256xf32>
    %321 = arith.mulf %320, %286 : vector<6x256xf32>
    %322 = vector.extract_strided_slice %283 {offsets = [5, 0, 0], sizes = [1, 6, 1], strides = [1, 1, 1]} : vector<9x6x1xf32> to vector<1x6x1xf32>
    %323 = vector.shape_cast %322 : vector<1x6x1xf32> to vector<6x1xf32>
    %324 = vector.broadcast %323 : vector<6x1xf32> to vector<6x256xf32>
    %325 = arith.mulf %324, %282 : vector<6x256xf32>
    %326 = arith.addf %321, %325 : vector<6x256xf32>
    %327 = vector.extract_strided_slice %283 {offsets = [8, 0, 0], sizes = [1, 6, 1], strides = [1, 1, 1]} : vector<9x6x1xf32> to vector<1x6x1xf32>
    %328 = vector.shape_cast %327 : vector<1x6x1xf32> to vector<6x1xf32>
    %329 = vector.broadcast %328 : vector<6x1xf32> to vector<6x256xf32>
    %330 = arith.mulf %329, %289 : vector<6x256xf32>
    %331 = arith.addf %326, %330 : vector<6x256xf32>
    %c1_i32_94 = arith.constant 1 : i32
    %332 = tpu.dynamic_rotate %303 by %c1_i32_94 dim 1 : vector<6x256xf32>, i32 -> vector<6x256xf32>
    %333 = vector.broadcast %5 : vector<1x256xf32> to vector<6x256xf32>
    %334 = arith.mulf %332, %333 : vector<6x256xf32>
    %335 = arith.addf %334, %317 : vector<6x256xf32>
    %c255_i32_95 = arith.constant 255 : i32
    %336 = tpu.dynamic_rotate %331 by %c255_i32_95 dim 1 : vector<6x256xf32>, i32 -> vector<6x256xf32>
    %337 = vector.broadcast %6 : vector<1x256xf32> to vector<6x256xf32>
    %338 = arith.mulf %336, %337 : vector<6x256xf32>
    %339 = arith.addf %335, %338 : vector<6x256xf32>
    %cst_96 = arith.constant 5.000000e-01 : f32
    %340 = vector.broadcast %cst_96 : f32 to vector<6x256xf32>
    %341 = arith.mulf %340, %339 : vector<6x256xf32>
    %cst_97 = arith.constant 0.707106769 : f32
    %342 = vector.broadcast %cst_97 : f32 to vector<6x256xf32>
    %343 = arith.mulf %339, %342 : vector<6x256xf32>
    %344 = math.absf %343 : vector<6x256xf32>
    %cst_98 = arith.constant 0.327591091 : f32
    %345 = vector.broadcast %cst_98 : f32 to vector<6x256xf32>
    %346 = arith.mulf %345, %344 : vector<6x256xf32>
    %cst_99 = arith.constant 1.000000e+00 : f32
    %347 = vector.broadcast %cst_99 : f32 to vector<6x256xf32>
    %348 = arith.addf %347, %346 : vector<6x256xf32>
    %349 = tpu.reciprocal %348 {approx = true} : vector<6x256xf32> -> vector<6x256xf32>
    %cst_100 = arith.constant 1.06140542 : f32
    %350 = vector.broadcast %cst_100 : f32 to vector<6x256xf32>
    %351 = arith.mulf %349, %350 : vector<6x256xf32>
    %cst_101 = arith.constant -1.45315206 : f32
    %352 = vector.broadcast %cst_101 : f32 to vector<6x256xf32>
    %353 = arith.addf %352, %351 : vector<6x256xf32>
    %354 = arith.mulf %349, %353 : vector<6x256xf32>
    %cst_102 = arith.constant 1.42141378 : f32
    %355 = vector.broadcast %cst_102 : f32 to vector<6x256xf32>
    %356 = arith.addf %355, %354 : vector<6x256xf32>
    %357 = arith.mulf %349, %356 : vector<6x256xf32>
    %cst_103 = arith.constant -0.284496725 : f32
    %358 = vector.broadcast %cst_103 : f32 to vector<6x256xf32>
    %359 = arith.addf %358, %357 : vector<6x256xf32>
    %360 = arith.mulf %349, %359 : vector<6x256xf32>
    %cst_104 = arith.constant 0.254829586 : f32
    %361 = vector.broadcast %cst_104 : f32 to vector<6x256xf32>
    %362 = arith.addf %361, %360 : vector<6x256xf32>
    %363 = arith.mulf %349, %362 : vector<6x256xf32>
    %cst_105 = arith.constant 0.000000e+00 : f32
    %364 = vector.broadcast %cst_105 : f32 to vector<6x256xf32>
    %365 = arith.subf %364, %344 : vector<6x256xf32>
    %366 = arith.mulf %365, %344 : vector<6x256xf32>
    %367 = math.exp %366 : vector<6x256xf32>
    %368 = arith.mulf %363, %367 : vector<6x256xf32>
    %cst_106 = arith.constant 1.000000e+00 : f32
    %369 = vector.broadcast %cst_106 : f32 to vector<6x256xf32>
    %370 = arith.subf %369, %368 : vector<6x256xf32>
    %cst_107 = arith.constant 0.000000e+00 : f32
    %371 = vector.broadcast %cst_107 : f32 to vector<6x256xf32>
    %372 = arith.cmpf oge, %343, %371 : vector<6x256xf32>
    %cst_108 = arith.constant 0.000000e+00 : f32
    %373 = vector.broadcast %cst_108 : f32 to vector<6x256xf32>
    %374 = arith.subf %373, %370 : vector<6x256xf32>
    %375 = arith.select %372, %370, %374 : vector<6x256xi1>, vector<6x256xf32>
    %cst_109 = arith.constant 1.000000e+00 : f32
    %376 = vector.broadcast %cst_109 : f32 to vector<6x256xf32>
    %377 = arith.addf %376, %375 : vector<6x256xf32>
    %378 = arith.mulf %341, %377 : vector<6x256xf32>
    %c0_110 = arith.constant 0 : index
    %c0_111 = arith.constant 0 : index
    %379 = vector.load %arg7[%c0_110, %c0_111] : memref<6x6xf32, #tpu.memory_space<vmem>>, vector<6x6xf32>
    %cst_112 = arith.constant dense<0.000000e+00> : vector<6x256xf32>
    %380 = tpu.matmul %379, %378, %cst_112 {dimension_numbers = #tpu.dot_dimension_numbers<[1], [0], [0], [1], [0, 0, 1, 1], [], []>} : vector<6x6xf32>, vector<6x256xf32>, vector<6x256xf32> -> vector<6x256xf32>
    %cst_113 = arith.constant 5.000000e-01 : f32
    %381 = vector.broadcast %cst_113 : f32 to vector<6x256xf32>
    %382 = arith.mulf %381, %380 : vector<6x256xf32>
    %cst_114 = arith.constant 0.707106769 : f32
    %383 = vector.broadcast %cst_114 : f32 to vector<6x256xf32>
    %384 = arith.mulf %380, %383 : vector<6x256xf32>
    %385 = math.absf %384 : vector<6x256xf32>
    %cst_115 = arith.constant 0.327591091 : f32
    %386 = vector.broadcast %cst_115 : f32 to vector<6x256xf32>
    %387 = arith.mulf %386, %385 : vector<6x256xf32>
    %cst_116 = arith.constant 1.000000e+00 : f32
    %388 = vector.broadcast %cst_116 : f32 to vector<6x256xf32>
    %389 = arith.addf %388, %387 : vector<6x256xf32>
    %390 = tpu.reciprocal %389 {approx = true} : vector<6x256xf32> -> vector<6x256xf32>
    %cst_117 = arith.constant 1.06140542 : f32
    %391 = vector.broadcast %cst_117 : f32 to vector<6x256xf32>
    %392 = arith.mulf %390, %391 : vector<6x256xf32>
    %cst_118 = arith.constant -1.45315206 : f32
    %393 = vector.broadcast %cst_118 : f32 to vector<6x256xf32>
    %394 = arith.addf %393, %392 : vector<6x256xf32>
    %395 = arith.mulf %390, %394 : vector<6x256xf32>
    %cst_119 = arith.constant 1.42141378 : f32
    %396 = vector.broadcast %cst_119 : f32 to vector<6x256xf32>
    %397 = arith.addf %396, %395 : vector<6x256xf32>
    %398 = arith.mulf %390, %397 : vector<6x256xf32>
    %cst_120 = arith.constant -0.284496725 : f32
    %399 = vector.broadcast %cst_120 : f32 to vector<6x256xf32>
    %400 = arith.addf %399, %398 : vector<6x256xf32>
    %401 = arith.mulf %390, %400 : vector<6x256xf32>
    %cst_121 = arith.constant 0.254829586 : f32
    %402 = vector.broadcast %cst_121 : f32 to vector<6x256xf32>
    %403 = arith.addf %402, %401 : vector<6x256xf32>
    %404 = arith.mulf %390, %403 : vector<6x256xf32>
    %cst_122 = arith.constant 0.000000e+00 : f32
    %405 = vector.broadcast %cst_122 : f32 to vector<6x256xf32>
    %406 = arith.subf %405, %385 : vector<6x256xf32>
    %407 = arith.mulf %406, %385 : vector<6x256xf32>
    %408 = math.exp %407 : vector<6x256xf32>
    %409 = arith.mulf %404, %408 : vector<6x256xf32>
    %cst_123 = arith.constant 1.000000e+00 : f32
    %410 = vector.broadcast %cst_123 : f32 to vector<6x256xf32>
    %411 = arith.subf %410, %409 : vector<6x256xf32>
    %cst_124 = arith.constant 0.000000e+00 : f32
    %412 = vector.broadcast %cst_124 : f32 to vector<6x256xf32>
    %413 = arith.cmpf oge, %384, %412 : vector<6x256xf32>
    %cst_125 = arith.constant 0.000000e+00 : f32
    %414 = vector.broadcast %cst_125 : f32 to vector<6x256xf32>
    %415 = arith.subf %414, %411 : vector<6x256xf32>
    %416 = arith.select %413, %411, %415 : vector<6x256xi1>, vector<6x256xf32>
    %cst_126 = arith.constant 1.000000e+00 : f32
    %417 = vector.broadcast %cst_126 : f32 to vector<6x256xf32>
    %418 = arith.addf %417, %416 : vector<6x256xf32>
    %419 = arith.mulf %382, %418 : vector<6x256xf32>
    %c0_127 = arith.constant 0 : index
    %c12 = arith.constant 12 : index
    %c0_128 = arith.constant 0 : index
    %420 = vector.load %arg8[%c0_127, %c12, %c0_128] : memref<1x24x256xf32, #tpu.memory_space<vmem>>, vector<1x6x256xf32>
    %421 = vector.shape_cast %420 : vector<1x6x256xf32> to vector<6x256xf32>
    %422 = vector.shape_cast %419 : vector<6x256xf32> to vector<1x6x256xf32>
    tpu.vector_store %arg8[%c0_127, %c12, %c0_128], %422 {strides = array<i32>} : memref<1x24x256xf32, #tpu.memory_space<vmem>>, vector<1x6x256xf32>,
    return
  }
  func.func @transform_0(%arg0: i32) -> (i32, i32, i32) {
    %c0_i32 = arith.constant 0 : i32
    %c0_i32_0 = arith.constant 0 : i32
    %c0_i32_1 = arith.constant 0 : i32
    return %arg0, %c0_i32, %c0_i32_0 : i32, i32, i32
  }
  func.func @transform_1(%arg0: i32) -> (i32, i32) {
    %c0_i32 = arith.constant 0 : i32
    %c0_i32_0 = arith.constant 0 : i32
    %c0_i32_1 = arith.constant 0 : i32
    return %c0_i32, %c0_i32_0 : i32, i32
  }
  func.func @transform_2(%arg0: i32) -> (i32, i32) {
    %c0_i32 = arith.constant 0 : i32
    %c0_i32_0 = arith.constant 0 : i32
    %c0_i32_1 = arith.constant 0 : i32
    return %c0_i32, %c0_i32_0 : i32, i32
  }
  func.func @transform_3(%arg0: i32) -> (i32, i32, i32) {
    %c0_i32 = arith.constant 0 : i32
    %c0_i32_0 = arith.constant 0 : i32
    %c0_i32_1 = arith.constant 0 : i32
    %c0_i32_2 = arith.constant 0 : i32
    return %c0_i32, %c0_i32_0, %c0_i32_1 : i32, i32, i32
  }
  func.func @transform_4(%arg0: i32) -> (i32, i32) {
    %c0_i32 = arith.constant 0 : i32
    %c0_i32_0 = arith.constant 0 : i32
    %c0_i32_1 = arith.constant 0 : i32
    return %c0_i32, %c0_i32_0 : i32, i32
  }
  func.func @transform_5(%arg0: i32) -> (i32, i32, i32) {
    %c0_i32 = arith.constant 0 : i32
    %c0_i32_0 = arith.constant 0 : i32
    %c0_i32_1 = arith.constant 0 : i32
    %c0_i32_2 = arith.constant 0 : i32
    return %c0_i32, %c0_i32_0, %c0_i32_1 : i32, i32, i32
  }
  func.func @transform_6(%arg0: i32) -> (i32, i32) {
    %c0_i32 = arith.constant 0 : i32
    %c0_i32_0 = arith.constant 0 : i32
    %c0_i32_1 = arith.constant 0 : i32
    return %c0_i32, %c0_i32_0 : i32, i32
  }
  func.func @transform_7(%arg0: i32) -> (i32, i32, i32) {
    %c0_i32 = arith.constant 0 : i32
    %c0_i32_0 = arith.constant 0 : i32
    %c0_i32_1 = arith.constant 0 : i32
    return %arg0, %c0_i32, %c0_i32_0 : i32, i32, i32
  }
}

</mosaic_0001>

<llo_original>
// kernel: tpu_custom_call.1
$region0: #{tpu_custom_call.1}
  #allocation0 [shape = 'u32[]', space=smem, size = 0x4, offset = 0x4, fixed_abs, tag = 'smem constant byte address 0x4 - core index']
  #allocation1 [shape = 'u32[144,128]{1,0:T(1,128)}', space=vmem, size = 0x12000, scoped, tag = 'internal scratch']
  %s0 = inlined_call_operand.vmem [shape: f32[2,16,256], index: 0, kind: input, shape index: {}]
  %s1 = inlined_call_operand.vmem [shape: f32[5,256], index: 1, kind: input, shape index: {}]
  %s2 = inlined_call_operand.vmem [shape: f32[20,16], index: 2, kind: input, shape index: {}]
  %s3 = inlined_call_operand.vmem [shape: f32[9,14,1], index: 3, kind: input, shape index: {}]
  %s4 = inlined_call_operand.vmem [shape: f32[12,8], index: 4, kind: input, shape index: {}]
  %s5 = inlined_call_operand.vmem [shape: f32[9,6,1], index: 5, kind: input, shape index: {}]
  %s6 = inlined_call_operand.vmem [shape: f32[6,6], index: 6, kind: input, shape index: {}]
  %s7 = inlined_call_operand.hbm [shape: f32[2,24,256], index: 7, kind: output, shape index: {}]
  %s8 = sld [smem:[#allocation0]]
  $region61: #{tpu_custom_call.1} parent=0
    _
  %s10 = ssub.s32 1, %s8
  %s11 = scalar_select 0, %s10, %s8
  $region1: #{tpu_custom_call.1} parent=0
    #allocation2 [shape = 'u8[49152]{0}', space=vmem, size = 0xc000, scoped, tag = 'output window, operand 0']
    #allocation3 [shape = 's32[2]{0}', space=sflag, size = 0x8, scoped, tag = 'scoped memory for tpu_custom_call.1']
    %12 = vsyncpa [#allocation3], 0
    %s13 = scalar_lea.sflag [#allocation3], 1
    %14 = vsyncpa %s13, 0
    loop: start=0, step=1, limit=4
    $region2: #{tpu_custom_call.1} parent=1 // loop_pre_header
      _
    $region3: #{tpu_custom_call.1} parent=1 // loop_header
      %s16 = sphi 0, %s20
      %p17 = scmp.ge.s32.totalorder %s16, 4
      %s26 = sphi 0, %s28
      %s29 = sphi 0, %s26
      %s30 = sphi 0, %s29
      %s46 = sphi 0, %s30
      %s50 = sphi 0, %s50
      %s52 = sphi 0, %s50
      %s53 = sphi 0, %s52
      %s67 = sphi 0, %s53
      %s71 = sphi 0, %s71
      %s73 = sphi 0, %s71
      %s74 = sphi 0, %s73
      %s88 = sphi 0, %s74
      %s92 = sphi 0, %s92
      %s94 = sphi 0, %s92
      %s95 = sphi 0, %s94
      %s109 = sphi 0, %s95
      %s113 = sphi 0, %s113
      %s115 = sphi 0, %s113
      %s116 = sphi 0, %s115
      %s130 = sphi 0, %s116
      %s134 = sphi 0, %s134
      %s136 = sphi 0, %s134
      %s137 = sphi 0, %s136
      %s151 = sphi 0, %s137
      %s155 = sphi 0, %s155
      %s157 = sphi 0, %s155
      %s158 = sphi 0, %s157
      %s172 = sphi 0, %s158
      %s178 = sphi 0, %s180
      %s181 = sphi 0, %s178
      %s182 = sphi 0, %s181
      %s198 = sphi 0, %s182
    $region4: #{tpu_custom_call.1} parent=1 // loop_header_branch
      %19 = sbr.rel (%p17) target = $region8
    $region5: #{tpu_custom_call.1} parent=1 // loop_body
      %s21 = ssub.s32 %s16, 1
      %s22 = ssub.s32 %s16, 2
      %s23 = sadd.s32 %s16, 1
      %s24 = ssub.s32 %s16, %s23
      %p25 = scmp.eq.s32.totalorder %s24, 0
      %s27 = sadd.s32 %s26, 1
      %s28 = scalar_select %p25, %s26, %s27
      %p31 = pneg %p25
      %p32 = scmp.eq.s32.totalorder %s16, 1
      %p33 = por %p31, %p32
      %p34 = scmp.ne.s32.totalorder %s26, %s29
      %p35 = scmp.eq.s32.totalorder %s16, 0
      %p36 = por %p34, %p35
      %p37 = scmp.ne.s32.totalorder %s26, %s29
      %p38 = scmp.eq.s32.totalorder %s21, 1
      %p39 = por %p37, %p38
      %p40 = scmp.ne.s32.totalorder %s29, %s30
      %p41 = scmp.eq.s32.totalorder %s21, 0
      %p42 = por %p40, %p41
      %p43 = scmp.ne.s32.totalorder %s29, %s30
      %p44 = scmp.eq.s32.totalorder %s22, 1
      %p45 = por %p43, %p44
      %p47 = scmp.ne.s32.totalorder %s30, %s46
      %p48 = scmp.eq.s32.totalorder %s22, 0
      %p49 = por %p47, %p48
      %s51 = sadd.s32 %s50, 1
      %p54 = scmp.eq.s32.totalorder %s16, 1
      %p55 = scmp.ne.s32.totalorder %s50, %s52
      %p56 = scmp.eq.s32.totalorder %s16, 0
      %p57 = por %p55, %p56
      %p58 = scmp.ne.s32.totalorder %s50, %s52
      %p59 = scmp.eq.s32.totalorder %s21, 1
      %p60 = por %p58, %p59
      %p61 = scmp.ne.s32.totalorder %s52, %s53
      %p62 = scmp.eq.s32.totalorder %s21, 0
      %p63 = por %p61, %p62
      %p64 = scmp.ne.s32.totalorder %s52, %s53
      %p65 = scmp.eq.s32.totalorder %s22, 1
      %p66 = por %p64, %p65
      %p68 = scmp.ne.s32.totalorder %s53, %s67
      %p69 = scmp.eq.s32.totalorder %s22, 0
      %p70 = por %p68, %p69
      %s72 = sadd.s32 %s71, 1
      %p75 = scmp.eq.s32.totalorder %s16, 1
      %p76 = scmp.ne.s32.totalorder %s71, %s73
      %p77 = scmp.eq.s32.totalorder %s16, 0
      %p78 = por %p76, %p77
      %p79 = scmp.ne.s32.totalorder %s71, %s73
      %p80 = scmp.eq.s32.totalorder %s21, 1
      %p81 = por %p79, %p80
      %p82 = scmp.ne.s32.totalorder %s73, %s74
      %p83 = scmp.eq.s32.totalorder %s21, 0
      %p84 = por %p82, %p83
      %p85 = scmp.ne.s32.totalorder %s73, %s74
      %p86 = scmp.eq.s32.totalorder %s22, 1
      %p87 = por %p85, %p86
      %p89 = scmp.ne.s32.totalorder %s74, %s88
      %p90 = scmp.eq.s32.totalorder %s22, 0
      %p91 = por %p89, %p90
      %s93 = sadd.s32 %s92, 1
      %p96 = scmp.eq.s32.totalorder %s16, 1
      %p97 = scmp.ne.s32.totalorder %s92, %s94
      %p98 = scmp.eq.s32.totalorder %s16, 0
      %p99 = por %p97, %p98
      %p100 = scmp.ne.s32.totalorder %s92, %s94
      %p101 = scmp.eq.s32.totalorder %s21, 1
      %p102 = por %p100, %p101
      %p103 = scmp.ne.s32.totalorder %s94, %s95
      %p104 = scmp.eq.s32.totalorder %s21, 0
      %p105 = por %p103, %p104
      %p106 = scmp.ne.s32.totalorder %s94, %s95
      %p107 = scmp.eq.s32.totalorder %s22, 1
      %p108 = por %p106, %p107
      %p110 = scmp.ne.s32.totalorder %s95, %s109
      %p111 = scmp.eq.s32.totalorder %s22, 0
      %p112 = por %p110, %p111
      %s114 = sadd.s32 %s113, 1
      %p117 = scmp.eq.s32.totalorder %s16, 1
      %p118 = scmp.ne.s32.totalorder %s113, %s115
      %p119 = scmp.eq.s32.totalorder %s16, 0
      %p120 = por %p118, %p119
      %p121 = scmp.ne.s32.totalorder %s113, %s115
      %p122 = scmp.eq.s32.totalorder %s21, 1
      %p123 = por %p121, %p122
      %p124 = scmp.ne.s32.totalorder %s115, %s116
      %p125 = scmp.eq.s32.totalorder %s21, 0
      %p126 = por %p124, %p125
      %p127 = scmp.ne.s32.totalorder %s115, %s116
      %p128 = scmp.eq.s32.totalorder %s22, 1
      %p129 = por %p127, %p128
      %p131 = scmp.ne.s32.totalorder %s116, %s130
      %p132 = scmp.eq.s32.totalorder %s22, 0
      %p133 = por %p131, %p132
      %s135 = sadd.s32 %s134, 1
      %p138 = scmp.eq.s32.totalorder %s16, 1
      %p139 = scmp.ne.s32.totalorder %s134, %s136
      %p140 = scmp.eq.s32.totalorder %s16, 0
      %p141 = por %p139, %p140
      %p142 = scmp.ne.s32.totalorder %s134, %s136
      %p143 = scmp.eq.s32.totalorder %s21, 1
      %p144 = por %p142, %p143
      %p145 = scmp.ne.s32.totalorder %s136, %s137
      %p146 = scmp.eq.s32.totalorder %s21, 0
      %p147 = por %p145, %p146
      %p148 = scmp.ne.s32.totalorder %s136, %s137
      %p149 = scmp.eq.s32.totalorder %s22, 1
      %p150 = por %p148, %p149
      %p152 = scmp.ne.s32.totalorder %s137, %s151
      %p153 = scmp.eq.s32.totalorder %s22, 0
      %p154 = por %p152, %p153
      %s156 = sadd.s32 %s155, 1
      %p159 = scmp.eq.s32.totalorder %s16, 1
      %p160 = scmp.ne.s32.totalorder %s155, %s157
      %p161 = scmp.eq.s32.totalorder %s16, 0
      %p162 = por %p160, %p161
      %p163 = scmp.ne.s32.totalorder %s155, %s157
      %p164 = scmp.eq.s32.totalorder %s21, 1
      %p165 = por %p163, %p164
      %p166 = scmp.ne.s32.totalorder %s157, %s158
      %p167 = scmp.eq.s32.totalorder %s21, 0
      %p168 = por %p166, %p167
      %p169 = scmp.ne.s32.totalorder %s157, %s158
      %p170 = scmp.eq.s32.totalorder %s22, 1
      %p171 = por %p169, %p170
      %p173 = scmp.ne.s32.totalorder %s158, %s172
      %p174 = scmp.eq.s32.totalorder %s22, 0
      %p175 = por %p173, %p174
      %s176 = ssub.s32 %s16, %s23
      %p177 = scmp.eq.s32.totalorder %s176, 0
      %s179 = sadd.s32 %s178, 1
      %s180 = scalar_select %p177, %s178, %s179
      %p183 = pneg %p177
      %p184 = scmp.eq.s32.totalorder %s16, 1
      %p185 = por %p183, %p184
      %p186 = scmp.ne.s32.totalorder %s178, %s181
      %p187 = scmp.eq.s32.totalorder %s16, 0
      %p188 = por %p186, %p187
      %p189 = scmp.ne.s32.totalorder %s178, %s181
      %p190 = scmp.eq.s32.totalorder %s21, 1
      %p191 = por %p189, %p190
      %p192 = scmp.ne.s32.totalorder %s181, %s182
      %p193 = scmp.eq.s32.totalorder %s21, 0
      %p194 = por %p192, %p193
      %p195 = scmp.ne.s32.totalorder %s181, %s182
      %p196 = scmp.eq.s32.totalorder %s22, 1
      %p197 = por %p195, %p196
      %p199 = scmp.ne.s32.totalorder %s182, %s198
      %p200 = scmp.eq.s32.totalorder %s22, 0
      %p201 = por %p199, %p200
      %p202 = scmp.le.s32.totalorder 1, %s16
      %p203 = scmp.lt.s32.totalorder %s16, 3
      %p204 = pnand %p202, %p203
      %p205 = pneg %p204
      // Predicated region
      $region9: #{tpu_custom_call.1} parent=5 // pred_check
        _
      $region10: #{tpu_custom_call.1} parent=5 // pred_check_branch
        %207 = sbr.rel (%p204) target = $region12
      $region11: #{tpu_custom_call.1} parent=5 // pred_region
        %s208 = ssub.s32 %s16, 1
        // Predicated region
        $region13: #{tpu_custom_call.1} parent=11 // pred_check
          %p209 = pneg %p63
        $region14: #{tpu_custom_call.1} parent=11 // pred_check_branch
          %211 = sbr.rel (%p209) target = $region16
        $region15: #{tpu_custom_call.1} parent=11 // pred_region
          _
        $region16: #{tpu_custom_call.1} parent=11 // pred_fallthru
          _
        // Predicated region
        $region17: #{tpu_custom_call.1} parent=11 // pred_check
          %p212 = pneg %p84
        $region18: #{tpu_custom_call.1} parent=11 // pred_check_branch
          %214 = sbr.rel (%p212) target = $region20
        $region19: #{tpu_custom_call.1} parent=11 // pred_region
          _
        $region20: #{tpu_custom_call.1} parent=11 // pred_fallthru
          _
        // Predicated region
        $region21: #{tpu_custom_call.1} parent=11 // pred_check
          %p215 = pneg %p105
        $region22: #{tpu_custom_call.1} parent=11 // pred_check_branch
          %217 = sbr.rel (%p215) target = $region24
        $region23: #{tpu_custom_call.1} parent=11 // pred_region
          _
        $region24: #{tpu_custom_call.1} parent=11 // pred_fallthru
          _
        // Predicated region
        $region25: #{tpu_custom_call.1} parent=11 // pred_check
          %p218 = pneg %p126
        $region26: #{tpu_custom_call.1} parent=11 // pred_check_branch
          %220 = sbr.rel (%p218) target = $region28
        $region27: #{tpu_custom_call.1} parent=11 // pred_region
          _
        $region28: #{tpu_custom_call.1} parent=11 // pred_fallthru
          _
        // Predicated region
        $region29: #{tpu_custom_call.1} parent=11 // pred_check
          %p221 = pneg %p147
        $region30: #{tpu_custom_call.1} parent=11 // pred_check_branch
          %223 = sbr.rel (%p221) target = $region32
        $region31: #{tpu_custom_call.1} parent=11 // pred_region
          _
        $region32: #{tpu_custom_call.1} parent=11 // pred_fallthru
          _
        // Predicated region
        $region33: #{tpu_custom_call.1} parent=11 // pred_check
          %p224 = pneg %p168
        $region34: #{tpu_custom_call.1} parent=11 // pred_check_branch
          %226 = sbr.rel (%p224) target = $region36
        $region35: #{tpu_custom_call.1} parent=11 // pred_region
          _
        $region36: #{tpu_custom_call.1} parent=11 // pred_fallthru
          _
      $region12: #{tpu_custom_call.1} parent=5 // pred_fallthru
        _
      %p227 = scmp.lt.s32.totalorder %s16, 2
      // Predicated region
      $region37: #{tpu_custom_call.1} parent=5 // pred_check
        %p228 = pneg %p227
      $region38: #{tpu_custom_call.1} parent=5 // pred_check_branch
        %230 = sbr.rel (%p228) target = $region40
      $region39: #{tpu_custom_call.1} parent=5 // pred_region
        // Predicated region
        $region41: #{tpu_custom_call.1} parent=39 // pred_check
          %p231 = pneg %p36
        $region42: #{tpu_custom_call.1} parent=39 // pred_check_branch
          %233 = sbr.rel (%p231) target = $region44
        $region43: #{tpu_custom_call.1} parent=39 // pred_region
          %p234 = scmp.lt.s32.totalorder %s16, 1
          %s235 = scalar_select %p234, %s16, 1
          %s236 = smul.addr %s235, 4
          %s237 = smul.addr %s236, 8
          %s238 = scalar_lea.vmem %s0, %s237
        $region44: #{tpu_custom_call.1} parent=39 // pred_fallthru
          _
      $region40: #{tpu_custom_call.1} parent=5 // pred_fallthru
        _
      %p239 = scmp.le.s32.totalorder 1, %s16
      %p240 = scmp.lt.s32.totalorder %s16, 3
      %p241 = pnand %p239, %p240
      %p242 = pneg %p241
      // Predicated region
      $region45: #{tpu_custom_call.1} parent=5 // pred_check
        _
      $region46: #{tpu_custom_call.1} parent=5 // pred_check_branch
        %244 = sbr.rel (%p241) target = $region48
      $region47: #{tpu_custom_call.1} parent=5 // pred_region
        %s245 = ssub.s32 %s16, 1
        %p246 = scmp.lt.s32.totalorder %s21, 1
        %s247 = scalar_select %p246, %s21, 1
        %s248 = smul.addr %s247, 4
        %s249 = smul.addr %s248, 8
        %s250 = scalar_lea.vmem %s0, %s249
        %p251 = pneg %p42
        %p252 = pneg %p39
        %p253 = pneg %p63
        %p254 = pneg %p60
        %p255 = pneg %p84
        %p256 = pneg %p81
        %p257 = pneg %p105
        %p258 = pneg %p102
        %p259 = pneg %p126
        %p260 = pneg %p123
        %p261 = pneg %p147
        %p262 = pneg %p144
        %p263 = pneg %p168
        %p264 = pneg %p165
        %p265 = pneg %p194
        %p266 = pneg %p191
        %s267 = sand.u32 %s181, 1
        %s268 = scalar_lea.sflag [#allocation3], %s267
        %s269 = sand.u32 %s181, 1
        %s270 = smul.addr %s269, 48
        %s271 = scalar_lea.vmem [#allocation2], %s270
        %p272 = scmp.lt.s32.totalorder %s21, 1
        %s273 = scalar_select %p272, %s21, 1
        %s274 = smul.addr %s273, 4
        %s275 = smul.addr %s274, 8
        %s276 = scalar_lea.vmem %s0, %s275
        %v277 = vld [vmem:[%s276] sm:$0xff]
        %v278 = vld [vmem:[%s276 + $0x8] sm:$0xff]
        %v279 = vld [vmem:[%s276 + $0x10] sm:$0xff]
        %v280 = vld [vmem:[%s276 + $0x18] sm:$0xff]
        %v281 = vld [vmem:[%s1] sm:$0x1f]
        %v282 = vld [vmem:[%s1 + $0x8] sm:$0x1f]
        %v283 = vld [vmem:[%s2] sm:$0xff]
        %v284 = vld [vmem:[%s2 + $0x8] sm:$0xff]
        %v285 = vld [vmem:[%s2 + $0x10] sm:$0xf]
        %vm286 = vcmask 130048
        %v288 = vsel %vm286, %v283, 0
        %v291 = vsel %vm286, %v284, 0
        %v294 = vsel %vm286, %v285, 0
        %296 = vmatprep.subr.mxu0 0.0
        %297 = vmatpush1.msra.mxu0 0.0
        %298 = vmatprep.subr.mxu0 0.0
        %299 = vmatpush1.msra.mxu0 0.0
        %300 = vmatprep.subr.mxu0 0.0
        %301 = vmatpush1.msra.mxu0 0.0
        %302 = vmatprep.subr.mxu0 0.0
        %303 = vmatpush1.msra.mxu0 0.0
        %304 = vmatprep.subr.mxu0 0.0
        %305 = vmatpush1.msra.mxu0 0.0
        %306 = vmatprep.subr.mxu0 0.0
        %307 = vmatpush1.msra.mxu0 0.0
        %308 = vmatprep.subr.mxu0 0.0
        %309 = vmatpush1.msra.mxu0 0.0
        %310 = vmatprep.subr.mxu0 0.0
        %311 = vmatpush1.msra.mxu0 0.0
        %312 = vmatprep.subr.mxu0 0.0
        %313 = vmatpush1.msra.mxu0 0.0
        %314 = vmatprep.subr.mxu0 0.0
        %315 = vmatpush1.msra.mxu0 0.0
        %316 = vmatprep.subr.mxu0 0.0
        %317 = vmatpush1.msra.mxu0 0.0
        %318 = vmatprep.subr.mxu0 0.0
        %319 = vmatpush1.msra.mxu0 0.0
        %320 = vmatprep.subr.mxu0 0.0
        %321 = vmatpush1.msra.mxu0 0.0
        %322 = vmatprep.subr.mxu0 0.0
        %323 = vmatpush1.msra.mxu0 0.0
        %324 = vmatprep.subr.mxu0 %v280
        %325 = vmatpush1.msra.mxu0 %v279
        %326 = vmatprep.subr.mxu0 %v278
        %327 = vmatpush1.msra.mxu0 %v277
        %328 = vmatprep.subr.mxu0 0.0
        %329 = vmatpush2.msra.mxu0 0.0
        %330 = vmatprep.subr.mxu0 0.0
        %331 = vmatpush2.msra.mxu0 0.0
        %332 = vmatprep.subr.mxu0 0.0
        %333 = vmatpush2.msra.mxu0 0.0
        %334 = vmatprep.subr.mxu0 0.0
        %335 = vmatpush2.msra.mxu0 0.0
        %336 = vmatprep.subr.mxu0 0.0
        %337 = vmatpush2.msra.mxu0 0.0
        %338 = vmatprep.subr.mxu0 0.0
        %339 = vmatpush2.msra.mxu0 0.0
        %340 = vmatprep.subr.mxu0 0.0
        %341 = vmatpush2.msra.mxu0 0.0
        %342 = vmatprep.subr.mxu0 0.0
        %343 = vmatpush2.msra.mxu0 0.0
        %344 = vmatprep.subr.mxu0 0.0
        %345 = vmatpush2.msra.mxu0 0.0
        %346 = vmatprep.subr.mxu0 0.0
        %347 = vmatpush2.msra.mxu0 0.0
        %348 = vmatprep.subr.mxu0 0.0
        %349 = vmatpush2.msra.mxu0 0.0
        %350 = vmatprep.subr.mxu0 0.0
        %351 = vmatpush2.msra.mxu0 0.0
        %352 = vmatprep.subr.mxu0 0.0
        %353 = vmatpush2.msra.mxu0 0.0
        %354 = vmatprep.subr.mxu0 0.0
        %355 = vmatpush2.msra.mxu0 0.0
        %356 = vmatprep.subr.mxu0 0.0
        %357 = vmatpush2.msra.mxu0 0.0
        %358 = vmatprep.subr.mxu0 0.0
        %359 = vmatpush2.msra.mxu0 0.0
        %360 = vmatprep.mubr.f32.mxu0 0.0
        %361 = vmatmul.mubr.f32.gmra.mxu0 %v288
        %v362 = vpop.f32.mrf.mxu0
        %v363 = vadd.f32 0.0, %v362
        %v364 = vpop.f32.mrf.mxu0
        %v365 = vadd.f32 0.0, %v364
        %366 = vmatprep.mubr.f32.mxu0 0.0
        %367 = vmatmul.mubr.f32.gmra.mxu0 %v291
        %v368 = vpop.f32.mrf.mxu0
        %v369 = vadd.f32 0.0, %v368
        %v370 = vpop.f32.mrf.mxu0
        %v371 = vadd.f32 0.0, %v370
        %372 = vmatprep.mubr.f32.mxu0 0.0
        %373 = vmatmul.mubr.f32.gmra.mxu0 %v294
        %v374 = vpop.f32.mrf.mxu0
        %v375 = vadd.f32 0.0, %v374
        %v376 = vpop.f32.mrf.mxu0
        %v377 = vadd.f32 0.0, %v376
        %378 = vdwg.mxu0
        %v379 = vmul.f32 %v369, 0.5
        %v380 = vmul.f32 %v371, 0.5
        %v381 = vmul.f32 %v375, 0.5
        %v382 = vmul.f32 %v377, 0.5
        %v383 = vmul.f32 %v369, 0.70710677
        %v384 = vmul.f32 %v371, 0.70710677
        %v385 = vmul.f32 %v375, 0.70710677
        %v386 = vmul.f32 %v377, 0.70710677
        %v387 = vand.u32 2147483647, %v383
        %v388 = vand.u32 2147483647, %v384
        %v389 = vand.u32 2147483647, %v385
        %v390 = vand.u32 2147483647, %v386
        %v391 = vmul.f32 %v387, 0.3275911
        %v392 = vmul.f32 %v388, 0.3275911
        %v393 = vmul.f32 %v389, 0.3275911
        %v394 = vmul.f32 %v390, 0.3275911
        %v395 = vadd.f32 %v391, 1.0
        %v396 = vadd.f32 %v392, 1.0
        %v397 = vadd.f32 %v393, 1.0
        %v398 = vadd.f32 %v394, 1.0
        %v399 = vrcp.pop %v395
        %v400 = vrcp.pop %v396
        %v401 = vrcp.pop %v397
        %v402 = vrcp.pop %v398
        %v403 = vmul.f32 %v399, 1.0614054
        %v404 = vmul.f32 %v400, 1.0614054
        %v405 = vmul.f32 %v401, 1.0614054
        %v406 = vmul.f32 %v402, 1.0614054
        %v407 = vadd.f32 %v403, -1.4531521
        %v408 = vadd.f32 %v404, -1.4531521
        %v409 = vadd.f32 %v405, -1.4531521
        %v410 = vadd.f32 %v406, -1.4531521
        %v411 = vmul.f32 %v399, %v407
        %v412 = vmul.f32 %v400, %v408
        %v413 = vmul.f32 %v401, %v409
        %v414 = vmul.f32 %v402, %v410
        %v415 = vadd.f32 %v411, 1.4214138
        %v416 = vadd.f32 %v412, 1.4214138
        %v417 = vadd.f32 %v413, 1.4214138
        %v418 = vadd.f32 %v414, 1.4214138
        %v419 = vmul.f32 %v399, %v415
        %v420 = vmul.f32 %v400, %v416
        %v421 = vmul.f32 %v401, %v417
        %v422 = vmul.f32 %v402, %v418
        %v423 = vadd.f32 %v419, -0.28449672
        %v424 = vadd.f32 %v420, -0.28449672
        %v425 = vadd.f32 %v421, -0.28449672
        %v426 = vadd.f32 %v422, -0.28449672
        %v427 = vmul.f32 %v399, %v423
        %v428 = vmul.f32 %v400, %v424
        %v429 = vmul.f32 %v401, %v425
        %v430 = vmul.f32 %v402, %v426
        %v431 = vadd.f32 %v427, 0.2548296
        %v432 = vadd.f32 %v428, 0.2548296
        %v433 = vadd.f32 %v429, 0.2548296
        %v434 = vadd.f32 %v430, 0.2548296
        %v435 = vmul.f32 %v399, %v431
        %v436 = vmul.f32 %v400, %v432
        %v437 = vmul.f32 %v401, %v433
        %v438 = vmul.f32 %v402, %v434
        %v439 = vsub.f32 0.0, %v387
        %v440 = vsub.f32 0.0, %v388
        %v441 = vsub.f32 0.0, %v389
        %v442 = vsub.f32 0.0, %v390
        %v443 = vmul.f32 %v439, %v387
        %v444 = vmul.f32 %v440, %v388
        %v445 = vmul.f32 %v441, %v389
        %v446 = vmul.f32 %v442, %v390
        %v447 = vmul.f32 %v443, 1.442695
        %v448 = vpow.pop %v447
        %v449 = vmul.f32 %v444, 1.442695
        %v450 = vpow.pop %v449
        %v451 = vmul.f32 %v445, 1.442695
        %v452 = vpow.pop %v451
        %v453 = vmul.f32 %v446, 1.442695
        %v454 = vpow.pop %v453
        %v455 = vmul.f32 %v435, %v448
        %v456 = vmul.f32 %v436, %v450
        %v457 = vmul.f32 %v437, %v452
        %v458 = vmul.f32 %v438, %v454
        %v459 = vsub.f32 1.0, %v455
        %v460 = vsub.f32 1.0, %v456
        %v461 = vsub.f32 1.0, %v457
        %v462 = vsub.f32 1.0, %v458
        %vm463 = vcmp.ge.f32.partialorder %v383, 0.0
        %vm464 = vcmp.ge.f32.partialorder %v384, 0.0
        %vm465 = vcmp.ge.f32.partialorder %v385, 0.0
        %vm466 = vcmp.ge.f32.partialorder %v386, 0.0
        %v467 = vsub.f32 0.0, %v459
        %v468 = vsub.f32 0.0, %v460
        %v469 = vsub.f32 0.0, %v461
        %v470 = vsub.f32 0.0, %v462
        %v471 = vsel %vm463, %v459, %v467
        %v472 = vsel %vm464, %v460, %v468
        %v473 = vsel %vm465, %v461, %v469
        %v474 = vsel %vm466, %v462, %v470
        %v475 = vadd.f32 %v471, 1.0
        %v476 = vadd.f32 %v472, 1.0
        %v477 = vadd.f32 %v473, 1.0
        %v478 = vadd.f32 %v474, 1.0
        %v479 = vmul.f32 %v379, %v475
        %v480 = vmul.f32 %v380, %v476
        %v481 = vmul.f32 %v381, %v477
        %v482 = vmul.f32 %v382, %v478
        %vm487 = vcmask 1041408
        %v488 = vrot.slane %v479, 6
        %v489 = vrot.slane %v481, 6
        %v490 = vsel %vm487, %v488, %v489
        %v491 = vrot.slane %v480, 6
        %v492 = vrot.slane %v482, 6
        %v493 = vsel %vm487, %v491, %v492
        %496 = vst [vmem:[%s271] sm:$0x3f] %v490
        %497 = vst [vmem:[%s271 + $0x8] sm:$0x3f] %v493
        %v498 = vmul.f32 %v363, 0.5
        %v499 = vmul.f32 %v365, 0.5
        %v500 = vmul.f32 %v363, 0.70710677
        %v501 = vmul.f32 %v365, 0.70710677
        %v502 = vand.u32 2147483647, %v500
        %v503 = vand.u32 2147483647, %v501
        %v504 = vmul.f32 %v502, 0.3275911
        %v505 = vmul.f32 %v503, 0.3275911
        %v506 = vadd.f32 %v504, 1.0
        %v507 = vadd.f32 %v505, 1.0
        %v508 = vrcp.pop %v506
        %v509 = vrcp.pop %v507
        %v510 = vmul.f32 %v508, 1.0614054
        %v511 = vmul.f32 %v509, 1.0614054
        %v512 = vadd.f32 %v510, -1.4531521
        %v513 = vadd.f32 %v511, -1.4531521
        %v514 = vmul.f32 %v508, %v512
        %v515 = vmul.f32 %v509, %v513
        %v516 = vadd.f32 %v514, 1.4214138
        %v517 = vadd.f32 %v515, 1.4214138
        %v518 = vmul.f32 %v508, %v516
        %v519 = vmul.f32 %v509, %v517
        %v520 = vadd.f32 %v518, -0.28449672
        %v521 = vadd.f32 %v519, -0.28449672
        %v522 = vmul.f32 %v508, %v520
        %v523 = vmul.f32 %v509, %v521
        %v524 = vadd.f32 %v522, 0.2548296
        %v525 = vadd.f32 %v523, 0.2548296
        %v526 = vmul.f32 %v508, %v524
        %v527 = vmul.f32 %v509, %v525
        %v528 = vsub.f32 0.0, %v502
        %v529 = vsub.f32 0.0, %v503
        %v530 = vmul.f32 %v528, %v502
        %v531 = vmul.f32 %v529, %v503
        %v532 = vmul.f32 %v530, 1.442695
        %v533 = vpow.pop %v532
        %v534 = vmul.f32 %v531, 1.442695
        %v535 = vpow.pop %v534
        %v536 = vmul.f32 %v526, %v533
        %v537 = vmul.f32 %v527, %v535
        %v538 = vsub.f32 1.0, %v536
        %v539 = vsub.f32 1.0, %v537
        %vm540 = vcmp.ge.f32.partialorder %v500, 0.0
        %vm541 = vcmp.ge.f32.partialorder %v501, 0.0
        %v542 = vsub.f32 0.0, %v538
        %v543 = vsub.f32 0.0, %v539
        %v544 = vsel %vm540, %v538, %v542
        %v545 = vsel %vm541, %v539, %v543
        %v546 = vadd.f32 %v544, 1.0
        %v547 = vadd.f32 %v545, 1.0
        %v548 = vmul.f32 %v498, %v546
        %v549 = vmul.f32 %v499, %v547
        %v550 = vld [vmem:[%s3] sm:$0xff]
        %v551 = vld [vmem:[%s3 + $0x8] sm:$0x3f]
        %v552 = vld [vmem:[%s3 + $0x10] sm:$0xff]
        %v553 = vld [vmem:[%s3 + $0x18] sm:$0x3f]
        %v554 = vld [vmem:[%s3 + $0x20] sm:$0xff]
        %v555 = vld [vmem:[%s3 + $0x28] sm:$0x3f]
        %v556 = vld [vmem:[%s3 + $0x30] sm:$0xff]
        %v557 = vld [vmem:[%s3 + $0x38] sm:$0x3f]
        %v558 = vld [vmem:[%s3 + $0x40] sm:$0xff]
        %v559 = vld [vmem:[%s3 + $0x48] sm:$0x3f]
        %v560 = vld [vmem:[%s3 + $0x50] sm:$0xff]
        %v561 = vld [vmem:[%s3 + $0x58] sm:$0x3f]
        %v562 = vld [vmem:[%s3 + $0x60] sm:$0xff]
        %v563 = vld [vmem:[%s3 + $0x68] sm:$0x3f]
        %v564 = vld [vmem:[%s3 + $0x70] sm:$0xff]
        %v565 = vld [vmem:[%s3 + $0x78] sm:$0x3f]
        %v566 = vld [vmem:[%s3 + $0x80] sm:$0xff]
        %v567 = vld [vmem:[%s3 + $0x88] sm:$0x3f]
        %568 = vrot.lane.b32.xlu0 %v548, 16
        %v569 = vpop.permute.xlu0 %568
        %570 = vrot.lane.b32.xlu0 %v369, 16
        %v571 = vpop.permute.xlu0 %570
        %572 = vrot.lane.b32.xlu0 %v549, 16
        %v573 = vpop.permute.xlu0 %572
        %574 = vrot.lane.b32.xlu0 %v371, 16
        %v575 = vpop.permute.xlu0 %574
        %v576 = vlaneseq
        %v577 = vand.u32 %v576, 127
        %vm578 = vcmp.lt.s32.totalorder %v577, 16
        %v579 = vsel %vm578, %v569, %v573
        %v580 = vsel %vm578, %v571, %v575
        %v581 = vsel %vm578, %v573, %v569
        %v582 = vsel %vm578, %v575, %v571
        %v583 = vlaneseq
        %v584 = vshrl.u32 %v583, 7
        %v585 = vsub.s32 0, %v584
        %v586 = vrot.slane %v281, %v585
        %v587 = vlaneseq
        %v588 = vshrl.u32 %v587, 7
        %v589 = vsub.s32 0, %v588
        %v590 = vrot.slane %v282, %v589
        %v591 = vmul.f32 %v581, %v586
        %v592 = vmul.f32 %v579, %v590
        %v593 = vmul.f32 %v582, %v586
        %v594 = vmul.f32 %v580, %v590
        %595 = vrot.lane.b32.xlu0 %v548, 112
        %v596 = vpop.permute.xlu0 %595
        %597 = vrot.lane.b32.xlu0 %v369, 112
        %v598 = vpop.permute.xlu0 %597
        %599 = vrot.lane.b32.xlu0 %v549, 112
        %v600 = vpop.permute.xlu0 %599
        %601 = vrot.lane.b32.xlu0 %v371, 112
        %v602 = vpop.permute.xlu0 %601
        %vm603 = vcmp.lt.s32.totalorder %v577, 112
        %v604 = vsel %vm603, %v596, %v600
        %v605 = vsel %vm603, %v598, %v602
        %v606 = vsel %vm603, %v600, %v596
        %v607 = vsel %vm603, %v602, %v598
        %v608 = vlaneseq
        %v609 = vshrl.u32 %v608, 7
        %v610 = vsub.s32 1, %v609
        %v611 = vrot.slane %v281, %v610
        %v612 = vlaneseq
        %v613 = vshrl.u32 %v612, 7
        %v614 = vsub.s32 1, %v613
        %v615 = vrot.slane %v282, %v614
        %v616 = vmul.f32 %v604, %v611
        %v617 = vmul.f32 %v606, %v615
        %v618 = vmul.f32 %v605, %v611
        %v619 = vmul.f32 %v607, %v615
        %621 = vset.pattern.permute.xlu0 0
        %622 = vperm.xlu0 %621, %v550
        %v623 = vpop.permute.xlu0 %622
        %626 = vset.pattern.permute.xlu0 0
        %627 = vperm.xlu0 %626, %v551
        %v628 = vpop.permute.xlu0 %627
        %v630 = vmul.f32 %v623, %v591
        %v631 = vmul.f32 %v623, %v592
        %v632 = vmul.f32 %v628, %v593
        %v633 = vmul.f32 %v628, %v594
        %635 = vset.pattern.permute.xlu0 0
        %636 = vperm.xlu0 %635, %v556
        %v637 = vpop.permute.xlu0 %636
        %640 = vset.pattern.permute.xlu0 0
        %641 = vperm.xlu0 %640, %v557
        %v642 = vpop.permute.xlu0 %641
        %v644 = vmul.f32 %v637, %v548
        %v645 = vmul.f32 %v637, %v549
        %v646 = vmul.f32 %v642, %v369
        %v647 = vmul.f32 %v642, %v371
        %v648 = vadd.f32 %v630, %v644
        %v649 = vadd.f32 %v631, %v645
        %v650 = vadd.f32 %v632, %v646
        %v651 = vadd.f32 %v633, %v647
        %653 = vset.pattern.permute.xlu0 0
        %654 = vperm.xlu0 %653, %v562
        %v655 = vpop.permute.xlu0 %654
        %658 = vset.pattern.permute.xlu0 0
        %659 = vperm.xlu0 %658, %v563
        %v660 = vpop.permute.xlu0 %659
        %v662 = vmul.f32 %v655, %v616
        %v663 = vmul.f32 %v655, %v617
        %v664 = vmul.f32 %v660, %v618
        %v665 = vmul.f32 %v660, %v619
        %v666 = vadd.f32 %v648, %v662
        %v667 = vadd.f32 %v649, %v663
        %v668 = vadd.f32 %v650, %v664
        %v669 = vadd.f32 %v651, %v665
        %671 = vset.pattern.permute.xlu0 0
        %672 = vperm.xlu0 %671, %v552
        %v673 = vpop.permute.xlu0 %672
        %676 = vset.pattern.permute.xlu0 0
        %677 = vperm.xlu0 %676, %v553
        %v678 = vpop.permute.xlu0 %677
        %v680 = vmul.f32 %v673, %v591
        %v681 = vmul.f32 %v673, %v592
        %v682 = vmul.f32 %v678, %v593
        %v683 = vmul.f32 %v678, %v594
        %685 = vset.pattern.permute.xlu0 0
        %686 = vperm.xlu0 %685, %v558
        %v687 = vpop.permute.xlu0 %686
        %690 = vset.pattern.permute.xlu0 0
        %691 = vperm.xlu0 %690, %v559
        %v692 = vpop.permute.xlu0 %691
        %v694 = vmul.f32 %v687, %v548
        %v695 = vmul.f32 %v687, %v549
        %v696 = vmul.f32 %v692, %v369
        %v697 = vmul.f32 %v692, %v371
        %v698 = vadd.f32 %v680, %v694
        %v699 = vadd.f32 %v681, %v695
        %v700 = vadd.f32 %v682, %v696
        %v701 = vadd.f32 %v683, %v697
        %703 = vset.pattern.permute.xlu0 0
        %704 = vperm.xlu0 %703, %v564
        %v705 = vpop.permute.xlu0 %704
        %708 = vset.pattern.permute.xlu0 0
        %709 = vperm.xlu0 %708, %v565
        %v710 = vpop.permute.xlu0 %709
        %v712 = vmul.f32 %v705, %v616
        %v713 = vmul.f32 %v705, %v617
        %v714 = vmul.f32 %v710, %v618
        %v715 = vmul.f32 %v710, %v619
        %v716 = vadd.f32 %v698, %v712
        %v717 = vadd.f32 %v699, %v713
        %v718 = vadd.f32 %v700, %v714
        %v719 = vadd.f32 %v701, %v715
        %721 = vset.pattern.permute.xlu0 0
        %722 = vperm.xlu0 %721, %v554
        %v723 = vpop.permute.xlu0 %722
        %726 = vset.pattern.permute.xlu0 0
        %727 = vperm.xlu0 %726, %v555
        %v728 = vpop.permute.xlu0 %727
        %v730 = vmul.f32 %v723, %v591
        %v731 = vmul.f32 %v723, %v592
        %v732 = vmul.f32 %v728, %v593
        %v733 = vmul.f32 %v728, %v594
        %735 = vset.pattern.permute.xlu0 0
        %736 = vperm.xlu0 %735, %v560
        %v737 = vpop.permute.xlu0 %736
        %740 = vset.pattern.permute.xlu0 0
        %741 = vperm.xlu0 %740, %v561
        %v742 = vpop.permute.xlu0 %741
        %v744 = vmul.f32 %v737, %v548
        %v745 = vmul.f32 %v737, %v549
        %v746 = vmul.f32 %v742, %v369
        %v747 = vmul.f32 %v742, %v371
        %v748 = vadd.f32 %v730, %v744
        %v749 = vadd.f32 %v731, %v745
        %v750 = vadd.f32 %v732, %v746
        %v751 = vadd.f32 %v733, %v747
        %753 = vset.pattern.permute.xlu0 0
        %754 = vperm.xlu0 %753, %v566
        %v755 = vpop.permute.xlu0 %754
        %758 = vset.pattern.permute.xlu0 0
        %759 = vperm.xlu0 %758, %v567
        %v760 = vpop.permute.xlu0 %759
        %v762 = vmul.f32 %v755, %v616
        %v763 = vmul.f32 %v755, %v617
        %v764 = vmul.f32 %v760, %v618
        %v765 = vmul.f32 %v760, %v619
        %v766 = vadd.f32 %v748, %v762
        %v767 = vadd.f32 %v749, %v763
        %v768 = vadd.f32 %v750, %v764
        %v769 = vadd.f32 %v751, %v765
        %770 = vrot.lane.b32.xlu0 %v666, 1
        %v771 = vpop.permute.xlu0 %770
        %772 = vrot.lane.b32.xlu0 %v668, 1
        %v773 = vpop.permute.xlu0 %772
        %774 = vrot.lane.b32.xlu0 %v667, 1
        %v775 = vpop.permute.xlu0 %774
        %776 = vrot.lane.b32.xlu0 %v669, 1
        %v777 = vpop.permute.xlu0 %776
        %vm778 = vcmp.lt.s32.totalorder %v577, 1
        %v779 = vsel %vm778, %v771, %v775
        %v780 = vsel %vm778, %v773, %v777
        %v781 = vsel %vm778, %v775, %v771
        %v782 = vsel %vm778, %v777, %v773
        %v783 = vlaneseq
        %v784 = vshrl.u32 %v783, 7
        %v785 = vsub.s32 2, %v784
        %v786 = vrot.slane %v281, %v785
        %v787 = vlaneseq
        %v788 = vshrl.u32 %v787, 7
        %v789 = vsub.s32 2, %v788
        %v790 = vrot.slane %v282, %v789
        %v791 = vmul.f32 %v781, %v786
        %v792 = vmul.f32 %v779, %v790
        %v793 = vmul.f32 %v782, %v786
        %v794 = vmul.f32 %v780, %v790
        %v795 = vadd.f32 %v791, %v716
        %v796 = vadd.f32 %v792, %v717
        %v797 = vadd.f32 %v793, %v718
        %v798 = vadd.f32 %v794, %v719
        %799 = vrot.lane.b32.xlu0 %v766, 127
        %v800 = vpop.permute.xlu0 %799
        %801 = vrot.lane.b32.xlu0 %v768, 127
        %v802 = vpop.permute.xlu0 %801
        %803 = vrot.lane.b32.xlu0 %v767, 127
        %v804 = vpop.permute.xlu0 %803
        %805 = vrot.lane.b32.xlu0 %v769, 127
        %v806 = vpop.permute.xlu0 %805
        %vm807 = vcmp.lt.s32.totalorder %v577, 127
        %v808 = vsel %vm807, %v800, %v804
        %v809 = vsel %vm807, %v802, %v806
        %v810 = vsel %vm807, %v804, %v800
        %v811 = vsel %vm807, %v806, %v802
        %v812 = vlaneseq
        %v813 = vshrl.u32 %v812, 7
        %v814 = vsub.s32 3, %v813
        %v815 = vrot.slane %v281, %v814
        %v816 = vlaneseq
        %v817 = vshrl.u32 %v816, 7
        %v818 = vsub.s32 3, %v817
        %v819 = vrot.slane %v282, %v818
        %v820 = vmul.f32 %v808, %v815
        %v821 = vmul.f32 %v810, %v819
        %v822 = vmul.f32 %v809, %v815
        %v823 = vmul.f32 %v811, %v819
        %v824 = vadd.f32 %v795, %v820
        %v825 = vadd.f32 %v796, %v821
        %v826 = vadd.f32 %v797, %v822
        %v827 = vadd.f32 %v798, %v823
        %v828 = vlaneseq
        %v829 = vshrl.u32 %v828, 7
        %v830 = vsub.s32 4, %v829
        %v831 = vrot.slane %v281, %v830
        %v832 = vlaneseq
        %v833 = vshrl.u32 %v832, 7
        %v834 = vsub.s32 4, %v833
        %v835 = vrot.slane %v282, %v834
        %v836 = vmul.f32 %v826, %v831
        %v837 = vmul.f32 %v827, %v835
        %v838 = vmul.f32 %v836, 0.5
        %v839 = vmul.f32 %v837, 0.5
        %v840 = vmul.f32 %v836, 0.70710677
        %v841 = vmul.f32 %v837, 0.70710677
        %v842 = vand.u32 2147483647, %v840
        %v843 = vand.u32 2147483647, %v841
        %v844 = vmul.f32 %v842, 0.3275911
        %v845 = vmul.f32 %v843, 0.3275911
        %v846 = vadd.f32 %v844, 1.0
        %v847 = vadd.f32 %v845, 1.0
        %v848 = vrcp.pop %v846
        %v849 = vrcp.pop %v847
        %v850 = vmul.f32 %v848, 1.0614054
        %v851 = vmul.f32 %v849, 1.0614054
        %v852 = vadd.f32 %v850, -1.4531521
        %v853 = vadd.f32 %v851, -1.4531521
        %v854 = vmul.f32 %v848, %v852
        %v855 = vmul.f32 %v849, %v853
        %v856 = vadd.f32 %v854, 1.4214138
        %v857 = vadd.f32 %v855, 1.4214138
        %v858 = vmul.f32 %v848, %v856
        %v859 = vmul.f32 %v849, %v857
        %v860 = vadd.f32 %v858, -0.28449672
        %v861 = vadd.f32 %v859, -0.28449672
        %v862 = vmul.f32 %v848, %v860
        %v863 = vmul.f32 %v849, %v861
        %v864 = vadd.f32 %v862, 0.2548296
        %v865 = vadd.f32 %v863, 0.2548296
        %v866 = vmul.f32 %v848, %v864
        %v867 = vmul.f32 %v849, %v865
        %v868 = vsub.f32 0.0, %v842
        %v869 = vsub.f32 0.0, %v843
        %v870 = vmul.f32 %v868, %v842
        %v871 = vmul.f32 %v869, %v843
        %v872 = vmul.f32 %v870, 1.442695
        %v873 = vpow.pop %v872
        %v874 = vmul.f32 %v871, 1.442695
        %v875 = vpow.pop %v874
        %v876 = vmul.f32 %v866, %v873
        %v877 = vmul.f32 %v867, %v875
        %v878 = vsub.f32 1.0, %v876
        %v879 = vsub.f32 1.0, %v877
        %vm880 = vcmp.ge.f32.partialorder %v840, 0.0
        %vm881 = vcmp.ge.f32.partialorder %v841, 0.0
        %v882 = vsub.f32 0.0, %v878
        %v883 = vsub.f32 0.0, %v879
        %v884 = vsel %vm880, %v878, %v882
        %v885 = vsel %vm881, %v879, %v883
        %v886 = vadd.f32 %v884, 1.0
        %v887 = vadd.f32 %v885, 1.0
        %v888 = vmul.f32 %v838, %v886
        %v889 = vmul.f32 %v839, %v887
        %v892 = vrot.slane %v888, 6
        %v893 = vrot.slane %v889, 6
        %896 = vst [vmem:[%s271 + $0x20] sm:$0xfc] %v892
        %897 = vst [vmem:[%s271 + $0x28] sm:$0xfc] %v893
        %v898 = vmul.f32 %v824, 0.5
        %v899 = vmul.f32 %v825, 0.5
        %v900 = vmul.f32 %v824, 0.70710677
        %v901 = vmul.f32 %v825, 0.70710677
        %v902 = vand.u32 2147483647, %v900
        %v903 = vand.u32 2147483647, %v901
        %v904 = vmul.f32 %v902, 0.3275911
        %v905 = vmul.f32 %v903, 0.3275911
        %v906 = vadd.f32 %v904, 1.0
        %v907 = vadd.f32 %v905, 1.0
        %v908 = vrcp.pop %v906
        %v909 = vrcp.pop %v907
        %v910 = vmul.f32 %v908, 1.0614054
        %v911 = vmul.f32 %v909, 1.0614054
        %v912 = vadd.f32 %v910, -1.4531521
        %v913 = vadd.f32 %v911, -1.4531521
        %v914 = vmul.f32 %v908, %v912
        %v915 = vmul.f32 %v909, %v913
        %v916 = vadd.f32 %v914, 1.4214138
        %v917 = vadd.f32 %v915, 1.4214138
        %v918 = vmul.f32 %v908, %v916
        %v919 = vmul.f32 %v909, %v917
        %v920 = vadd.f32 %v918, -0.28449672
        %v921 = vadd.f32 %v919, -0.28449672
        %v922 = vmul.f32 %v908, %v920
        %v923 = vmul.f32 %v909, %v921
        %v924 = vadd.f32 %v922, 0.2548296
        %v925 = vadd.f32 %v923, 0.2548296
        %v926 = vmul.f32 %v908, %v924
        %v927 = vmul.f32 %v909, %v925
        %v928 = vsub.f32 0.0, %v902
        %v929 = vsub.f32 0.0, %v903
        %v930 = vmul.f32 %v928, %v902
        %v931 = vmul.f32 %v929, %v903
        %v932 = vmul.f32 %v930, 1.442695
        %v933 = vpow.pop %v932
        %v934 = vmul.f32 %v931, 1.442695
        %v935 = vpow.pop %v934
        %v936 = vmul.f32 %v926, %v933
        %v937 = vmul.f32 %v927, %v935
        %v938 = vsub.f32 1.0, %v936
        %v939 = vsub.f32 1.0, %v937
        %vm940 = vcmp.ge.f32.partialorder %v900, 0.0
        %vm941 = vcmp.ge.f32.partialorder %v901, 0.0
        %v942 = vsub.f32 0.0, %v938
        %v943 = vsub.f32 0.0, %v939
        %v944 = vsel %vm940, %v938, %v942
        %v945 = vsel %vm941, %v939, %v943
        %v946 = vadd.f32 %v944, 1.0
        %v947 = vadd.f32 %v945, 1.0
        %v948 = vmul.f32 %v898, %v946
        %v949 = vmul.f32 %v899, %v947
        %v950 = vld [vmem:[%s4] sm:$0xff]
        %v951 = vld [vmem:[%s4 + $0x8] sm:$0xf]
        %vm952 = vcmask 64512
        %v954 = vsel %vm952, %v950, 0
        %v957 = vsel %vm952, %v951, 0
        %959 = vmatprep.subr.mxu0 0.0
        %960 = vmatpush1.msra.mxu0 0.0
        %961 = vmatprep.subr.mxu0 0.0
        %962 = vmatpush1.msra.mxu0 0.0
        %963 = vmatprep.subr.mxu0 0.0
        %964 = vmatpush1.msra.mxu0 0.0
        %965 = vmatprep.subr.mxu0 0.0
        %966 = vmatpush1.msra.mxu0 0.0
        %967 = vmatprep.subr.mxu0 0.0
        %968 = vmatpush1.msra.mxu0 0.0
        %969 = vmatprep.subr.mxu0 0.0
        %970 = vmatpush1.msra.mxu0 0.0
        %971 = vmatprep.subr.mxu0 0.0
        %972 = vmatpush1.msra.mxu0 0.0
        %973 = vmatprep.subr.mxu0 0.0
        %974 = vmatpush1.msra.mxu0 0.0
        %975 = vmatprep.subr.mxu0 0.0
        %976 = vmatpush1.msra.mxu0 0.0
        %977 = vmatprep.subr.mxu0 0.0
        %978 = vmatpush1.msra.mxu0 0.0
        %979 = vmatprep.subr.mxu0 0.0
        %980 = vmatpush1.msra.mxu0 0.0
        %981 = vmatprep.subr.mxu0 0.0
        %982 = vmatpush1.msra.mxu0 0.0
        %983 = vmatprep.subr.mxu0 0.0
        %984 = vmatpush1.msra.mxu0 0.0
        %985 = vmatprep.subr.mxu0 0.0
        %986 = vmatpush1.msra.mxu0 0.0
        %987 = vmatprep.subr.mxu0 0.0
        %988 = vmatpush1.msra.mxu0 0.0
        %989 = vmatprep.subr.mxu0 %v949
        %990 = vmatpush1.msra.mxu0 %v948
        %991 = vmatprep.subr.mxu0 0.0
        %992 = vmatpush2.msra.mxu0 0.0
        %993 = vmatprep.subr.mxu0 0.0
        %994 = vmatpush2.msra.mxu0 0.0
        %995 = vmatprep.subr.mxu0 0.0
        %996 = vmatpush2.msra.mxu0 0.0
        %997 = vmatprep.subr.mxu0 0.0
        %998 = vmatpush2.msra.mxu0 0.0
        %999 = vmatprep.subr.mxu0 0.0
        %1000 = vmatpush2.msra.mxu0 0.0
        %1001 = vmatprep.subr.mxu0 0.0
        %1002 = vmatpush2.msra.mxu0 0.0
        %1003 = vmatprep.subr.mxu0 0.0
        %1004 = vmatpush2.msra.mxu0 0.0
        %1005 = vmatprep.subr.mxu0 0.0
        %1006 = vmatpush2.msra.mxu0 0.0
        %1007 = vmatprep.subr.mxu0 0.0
        %1008 = vmatpush2.msra.mxu0 0.0
        %1009 = vmatprep.subr.mxu0 0.0
        %1010 = vmatpush2.msra.mxu0 0.0
        %1011 = vmatprep.subr.mxu0 0.0
        %1012 = vmatpush2.msra.mxu0 0.0
        %1013 = vmatprep.subr.mxu0 0.0
        %1014 = vmatpush2.msra.mxu0 0.0
        %1015 = vmatprep.subr.mxu0 0.0
        %1016 = vmatpush2.msra.mxu0 0.0
        %1017 = vmatprep.subr.mxu0 0.0
        %1018 = vmatpush2.msra.mxu0 0.0
        %1019 = vmatprep.subr.mxu0 0.0
        %1020 = vmatpush2.msra.mxu0 0.0
        %1021 = vmatprep.subr.mxu0 0.0
        %1022 = vmatpush2.msra.mxu0 0.0
        %1023 = vmatprep.mubr.f32.mxu0 0.0
        %1024 = vmatmul.mubr.f32.gmra.mxu0 %v954
        %v1025 = vpop.f32.mrf.mxu0
        %v1026 = vadd.f32 0.0, %v1025
        %v1027 = vpop.f32.mrf.mxu0
        %v1028 = vadd.f32 0.0, %v1027
        %1029 = vmatprep.mubr.f32.mxu0 0.0
        %1030 = vmatmul.mubr.f32.gmra.mxu0 %v957
        %v1031 = vpop.f32.mrf.mxu0
        %v1032 = vadd.f32 0.0, %v1031
        %v1033 = vpop.f32.mrf.mxu0
        %v1034 = vadd.f32 0.0, %v1033
        %1035 = vdwg.mxu0
        %v1036 = vmul.f32 %v1026, 0.5
        %v1037 = vmul.f32 %v1028, 0.5
        %v1038 = vmul.f32 %v1032, 0.5
        %v1039 = vmul.f32 %v1034, 0.5
        %v1040 = vmul.f32 %v1026, 0.70710677
        %v1041 = vmul.f32 %v1028, 0.70710677
        %v1042 = vmul.f32 %v1032, 0.70710677
        %v1043 = vmul.f32 %v1034, 0.70710677
        %v1044 = vand.u32 2147483647, %v1040
        %v1045 = vand.u32 2147483647, %v1041
        %v1046 = vand.u32 2147483647, %v1042
        %v1047 = vand.u32 2147483647, %v1043
        %v1048 = vmul.f32 %v1044, 0.3275911
        %v1049 = vmul.f32 %v1045, 0.3275911
        %v1050 = vmul.f32 %v1046, 0.3275911
        %v1051 = vmul.f32 %v1047, 0.3275911
        %v1052 = vadd.f32 %v1048, 1.0
        %v1053 = vadd.f32 %v1049, 1.0
        %v1054 = vadd.f32 %v1050, 1.0
        %v1055 = vadd.f32 %v1051, 1.0
        %v1056 = vrcp.pop %v1052
        %v1057 = vrcp.pop %v1053
        %v1058 = vrcp.pop %v1054
        %v1059 = vrcp.pop %v1055
        %v1060 = vmul.f32 %v1056, 1.0614054
        %v1061 = vmul.f32 %v1057, 1.0614054
        %v1062 = vmul.f32 %v1058, 1.0614054
        %v1063 = vmul.f32 %v1059, 1.0614054
        %v1064 = vadd.f32 %v1060, -1.4531521
        %v1065 = vadd.f32 %v1061, -1.4531521
        %v1066 = vadd.f32 %v1062, -1.4531521
        %v1067 = vadd.f32 %v1063, -1.4531521
        %v1068 = vmul.f32 %v1056, %v1064
        %v1069 = vmul.f32 %v1057, %v1065
        %v1070 = vmul.f32 %v1058, %v1066
        %v1071 = vmul.f32 %v1059, %v1067
        %v1072 = vadd.f32 %v1068, 1.4214138
        %v1073 = vadd.f32 %v1069, 1.4214138
        %v1074 = vadd.f32 %v1070, 1.4214138
        %v1075 = vadd.f32 %v1071, 1.4214138
        %v1076 = vmul.f32 %v1056, %v1072
        %v1077 = vmul.f32 %v1057, %v1073
        %v1078 = vmul.f32 %v1058, %v1074
        %v1079 = vmul.f32 %v1059, %v1075
        %v1080 = vadd.f32 %v1076, -0.28449672
        %v1081 = vadd.f32 %v1077, -0.28449672
        %v1082 = vadd.f32 %v1078, -0.28449672
        %v1083 = vadd.f32 %v1079, -0.28449672
        %v1084 = vmul.f32 %v1056, %v1080
        %v1085 = vmul.f32 %v1057, %v1081
        %v1086 = vmul.f32 %v1058, %v1082
        %v1087 = vmul.f32 %v1059, %v1083
        %v1088 = vadd.f32 %v1084, 0.2548296
        %v1089 = vadd.f32 %v1085, 0.2548296
        %v1090 = vadd.f32 %v1086, 0.2548296
        %v1091 = vadd.f32 %v1087, 0.2548296
        %v1092 = vmul.f32 %v1056, %v1088
        %v1093 = vmul.f32 %v1057, %v1089
        %v1094 = vmul.f32 %v1058, %v1090
        %v1095 = vmul.f32 %v1059, %v1091
        %v1096 = vsub.f32 0.0, %v1044
        %v1097 = vsub.f32 0.0, %v1045
        %v1098 = vsub.f32 0.0, %v1046
        %v1099 = vsub.f32 0.0, %v1047
        %v1100 = vmul.f32 %v1096, %v1044
        %v1101 = vmul.f32 %v1097, %v1045
        %v1102 = vmul.f32 %v1098, %v1046
        %v1103 = vmul.f32 %v1099, %v1047
        %v1104 = vmul.f32 %v1100, 1.442695
        %v1105 = vpow.pop %v1104
        %v1106 = vmul.f32 %v1101, 1.442695
        %v1107 = vpow.pop %v1106
        %v1108 = vmul.f32 %v1102, 1.442695
        %v1109 = vpow.pop %v1108
        %v1110 = vmul.f32 %v1103, 1.442695
        %v1111 = vpow.pop %v1110
        %v1112 = vmul.f32 %v1092, %v1105
        %v1113 = vmul.f32 %v1093, %v1107
        %v1114 = vmul.f32 %v1094, %v1109
        %v1115 = vmul.f32 %v1095, %v1111
        %v1116 = vsub.f32 1.0, %v1112
        %v1117 = vsub.f32 1.0, %v1113
        %v1118 = vsub.f32 1.0, %v1114
        %v1119 = vsub.f32 1.0, %v1115
        %vm1120 = vcmp.ge.f32.partialorder %v1040, 0.0
        %vm1121 = vcmp.ge.f32.partialorder %v1041, 0.0
        %vm1122 = vcmp.ge.f32.partialorder %v1042, 0.0
        %vm1123 = vcmp.ge.f32.partialorder %v1043, 0.0
        %v1124 = vsub.f32 0.0, %v1116
        %v1125 = vsub.f32 0.0, %v1117
        %v1126 = vsub.f32 0.0, %v1118
        %v1127 = vsub.f32 0.0, %v1119
        %v1128 = vsel %vm1120, %v1116, %v1124
        %v1129 = vsel %vm1121, %v1117, %v1125
        %v1130 = vsel %vm1122, %v1118, %v1126
        %v1131 = vsel %vm1123, %v1119, %v1127
        %v1132 = vadd.f32 %v1128, 1.0
        %v1133 = vadd.f32 %v1129, 1.0
        %v1134 = vadd.f32 %v1130, 1.0
        %v1135 = vadd.f32 %v1131, 1.0
        %v1136 = vmul.f32 %v1036, %v1132
        %v1137 = vmul.f32 %v1037, %v1133
        %v1138 = vmul.f32 %v1038, %v1134
        %v1139 = vmul.f32 %v1039, %v1135
        %v1142 = vrot.slane %v1136, 2
        %v1143 = vrot.slane %v1137, 2
        %1146 = vst [vmem:[%s271] sm:$0xc0] %v1142
        %1147 = vst [vmem:[%s271 + $0x8] sm:$0xc0] %v1143
        %1148 = vst [vmem:[%s271 + $0x10] sm:$0xf] %v1142
        %1149 = vst [vmem:[%s271 + $0x18] sm:$0xf] %v1143
        %v1150 = vld [vmem:[%s5] sm:$0x3f]
        %v1151 = vld [vmem:[%s5 + $0x8] sm:$0x3f]
        %v1152 = vld [vmem:[%s5 + $0x10] sm:$0x3f]
        %v1153 = vld [vmem:[%s5 + $0x18] sm:$0x3f]
        %v1154 = vld [vmem:[%s5 + $0x20] sm:$0x3f]
        %v1155 = vld [vmem:[%s5 + $0x28] sm:$0x3f]
        %v1156 = vld [vmem:[%s5 + $0x30] sm:$0x3f]
        %v1157 = vld [vmem:[%s5 + $0x38] sm:$0x3f]
        %v1158 = vld [vmem:[%s5 + $0x40] sm:$0x3f]
        %v1161 = vrot.slane %v1136, 6
        %v1162 = vrot.slane %v1138, 6
        %v1163 = vsel %vm487, %v1161, %v1162
        %v1164 = vrot.slane %v1137, 6
        %v1165 = vrot.slane %v1139, 6
        %v1166 = vsel %vm487, %v1164, %v1165
        %1169 = vrot.lane.b32.xlu0 %v1163, 16
        %v1170 = vpop.permute.xlu0 %1169
        %1171 = vrot.lane.b32.xlu0 %v1166, 16
        %v1172 = vpop.permute.xlu0 %1171
        %v1173 = vsel %vm578, %v1170, %v1172
        %v1174 = vsel %vm578, %v1172, %v1170
        %v1175 = vmul.f32 %v1174, %v586
        %v1176 = vmul.f32 %v1173, %v590
        %1177 = vrot.lane.b32.xlu0 %v1163, 112
        %v1178 = vpop.permute.xlu0 %1177
        %1179 = vrot.lane.b32.xlu0 %v1166, 112
        %v1180 = vpop.permute.xlu0 %1179
        %v1181 = vsel %vm603, %v1178, %v1180
        %v1182 = vsel %vm603, %v1180, %v1178
        %v1183 = vmul.f32 %v1181, %v611
        %v1184 = vmul.f32 %v1182, %v615
        %1186 = vset.pattern.permute.xlu0 0
        %1187 = vperm.xlu0 %1186, %v1150
        %v1188 = vpop.permute.xlu0 %1187
        %v1190 = vmul.f32 %v1188, %v1175
        %v1191 = vmul.f32 %v1188, %v1176
        %1193 = vset.pattern.permute.xlu0 0
        %1194 = vperm.xlu0 %1193, %v1153
        %v1195 = vpop.permute.xlu0 %1194
        %v1197 = vmul.f32 %v1195, %v1163
        %v1198 = vmul.f32 %v1195, %v1166
        %v1199 = vadd.f32 %v1190, %v1197
        %v1200 = vadd.f32 %v1191, %v1198
        %1202 = vset.pattern.permute.xlu0 0
        %1203 = vperm.xlu0 %1202, %v1156
        %v1204 = vpop.permute.xlu0 %1203
        %v1206 = vmul.f32 %v1204, %v1183
        %v1207 = vmul.f32 %v1204, %v1184
        %v1208 = vadd.f32 %v1199, %v1206
        %v1209 = vadd.f32 %v1200, %v1207
        %1211 = vset.pattern.permute.xlu0 0
        %1212 = vperm.xlu0 %1211, %v1151
        %v1213 = vpop.permute.xlu0 %1212
        %v1215 = vmul.f32 %v1213, %v1175
        %v1216 = vmul.f32 %v1213, %v1176
        %1218 = vset.pattern.permute.xlu0 0
        %1219 = vperm.xlu0 %1218, %v1154
        %v1220 = vpop.permute.xlu0 %1219
        %v1222 = vmul.f32 %v1220, %v1163
        %v1223 = vmul.f32 %v1220, %v1166
        %v1224 = vadd.f32 %v1215, %v1222
        %v1225 = vadd.f32 %v1216, %v1223
        %1227 = vset.pattern.permute.xlu0 0
        %1228 = vperm.xlu0 %1227, %v1157
        %v1229 = vpop.permute.xlu0 %1228
        %v1231 = vmul.f32 %v1229, %v1183
        %v1232 = vmul.f32 %v1229, %v1184
        %v1233 = vadd.f32 %v1224, %v1231
        %v1234 = vadd.f32 %v1225, %v1232
        %1236 = vset.pattern.permute.xlu0 0
        %1237 = vperm.xlu0 %1236, %v1152
        %v1238 = vpop.permute.xlu0 %1237
        %v1240 = vmul.f32 %v1238, %v1175
        %v1241 = vmul.f32 %v1238, %v1176
        %1243 = vset.pattern.permute.xlu0 0
        %1244 = vperm.xlu0 %1243, %v1155
        %v1245 = vpop.permute.xlu0 %1244
        %v1247 = vmul.f32 %v1245, %v1163
        %v1248 = vmul.f32 %v1245, %v1166
        %v1249 = vadd.f32 %v1240, %v1247
        %v1250 = vadd.f32 %v1241, %v1248
        %1252 = vset.pattern.permute.xlu0 0
        %1253 = vperm.xlu0 %1252, %v1158
        %v1254 = vpop.permute.xlu0 %1253
        %v1256 = vmul.f32 %v1254, %v1183
        %v1257 = vmul.f32 %v1254, %v1184
        %v1258 = vadd.f32 %v1249, %v1256
        %v1259 = vadd.f32 %v1250, %v1257
        %1260 = vrot.lane.b32.xlu0 %v1208, 1
        %v1261 = vpop.permute.xlu0 %1260
        %1262 = vrot.lane.b32.xlu0 %v1209, 1
        %v1263 = vpop.permute.xlu0 %1262
        %v1264 = vsel %vm778, %v1261, %v1263
        %v1265 = vsel %vm778, %v1263, %v1261
        %v1266 = vmul.f32 %v1265, %v786
        %v1267 = vmul.f32 %v1264, %v790
        %v1268 = vadd.f32 %v1266, %v1233
        %v1269 = vadd.f32 %v1267, %v1234
        %1270 = vrot.lane.b32.xlu0 %v1258, 127
        %v1271 = vpop.permute.xlu0 %1270
        %1272 = vrot.lane.b32.xlu0 %v1259, 127
        %v1273 = vpop.permute.xlu0 %1272
        %v1274 = vsel %vm807, %v1271, %v1273
        %v1275 = vsel %vm807, %v1273, %v1271
        %v1276 = vmul.f32 %v1274, %v815
        %v1277 = vmul.f32 %v1275, %v819
        %v1278 = vadd.f32 %v1268, %v1276
        %v1279 = vadd.f32 %v1269, %v1277
        %v1280 = vmul.f32 %v1278, 0.5
        %v1281 = vmul.f32 %v1279, 0.5
        %v1282 = vmul.f32 %v1278, 0.70710677
        %v1283 = vmul.f32 %v1279, 0.70710677
        %v1284 = vand.u32 2147483647, %v1282
        %v1285 = vand.u32 2147483647, %v1283
        %v1286 = vmul.f32 %v1284, 0.3275911
        %v1287 = vmul.f32 %v1285, 0.3275911
        %v1288 = vadd.f32 %v1286, 1.0
        %v1289 = vadd.f32 %v1287, 1.0
        %v1290 = vrcp.pop %v1288
        %v1291 = vrcp.pop %v1289
        %v1292 = vmul.f32 %v1290, 1.0614054
        %v1293 = vmul.f32 %v1291, 1.0614054
        %v1294 = vadd.f32 %v1292, -1.4531521
        %v1295 = vadd.f32 %v1293, -1.4531521
        %v1296 = vmul.f32 %v1290, %v1294
        %v1297 = vmul.f32 %v1291, %v1295
        %v1298 = vadd.f32 %v1296, 1.4214138
        %v1299 = vadd.f32 %v1297, 1.4214138
        %v1300 = vmul.f32 %v1290, %v1298
        %v1301 = vmul.f32 %v1291, %v1299
        %v1302 = vadd.f32 %v1300, -0.28449672
        %v1303 = vadd.f32 %v1301, -0.28449672
        %v1304 = vmul.f32 %v1290, %v1302
        %v1305 = vmul.f32 %v1291, %v1303
        %v1306 = vadd.f32 %v1304, 0.2548296
        %v1307 = vadd.f32 %v1305, 0.2548296
        %v1308 = vmul.f32 %v1290, %v1306
        %v1309 = vmul.f32 %v1291, %v1307
        %v1310 = vsub.f32 0.0, %v1284
        %v1311 = vsub.f32 0.0, %v1285
        %v1312 = vmul.f32 %v1310, %v1284
        %v1313 = vmul.f32 %v1311, %v1285
        %v1314 = vmul.f32 %v1312, 1.442695
        %v1315 = vpow.pop %v1314
        %v1316 = vmul.f32 %v1313, 1.442695
        %v1317 = vpow.pop %v1316
        %v1318 = vmul.f32 %v1308, %v1315
        %v1319 = vmul.f32 %v1309, %v1317
        %v1320 = vsub.f32 1.0, %v1318
        %v1321 = vsub.f32 1.0, %v1319
        %vm1322 = vcmp.ge.f32.partialorder %v1282, 0.0
        %vm1323 = vcmp.ge.f32.partialorder %v1283, 0.0
        %v1324 = vsub.f32 0.0, %v1320
        %v1325 = vsub.f32 0.0, %v1321
        %v1326 = vsel %vm1322, %v1320, %v1324
        %v1327 = vsel %vm1323, %v1321, %v1325
        %v1328 = vadd.f32 %v1326, 1.0
        %v1329 = vadd.f32 %v1327, 1.0
        %v1330 = vmul.f32 %v1280, %v1328
        %v1331 = vmul.f32 %v1281, %v1329
        %v1332 = vld [vmem:[%s6] sm:$0x3f]
        %vm1333 = vcmask 48128
        %v1335 = vsel %vm1333, %v1332, 0
        %vm1337 = vcmask 1045504
        %v1339 = vsel %vm1337, %v1330, 0
        %v1342 = vsel %vm1337, %v1331, 0
        %1344 = vmatprep.subr.mxu0 0.0
        %1345 = vmatpush1.msra.mxu0 0.0
        %1346 = vmatprep.subr.mxu0 0.0
        %1347 = vmatpush1.msra.mxu0 0.0
        %1348 = vmatprep.subr.mxu0 0.0
        %1349 = vmatpush1.msra.mxu0 0.0
        %1350 = vmatprep.subr.mxu0 0.0
        %1351 = vmatpush1.msra.mxu0 0.0
        %1352 = vmatprep.subr.mxu0 0.0
        %1353 = vmatpush1.msra.mxu0 0.0
        %1354 = vmatprep.subr.mxu0 0.0
        %1355 = vmatpush1.msra.mxu0 0.0
        %1356 = vmatprep.subr.mxu0 0.0
        %1357 = vmatpush1.msra.mxu0 0.0
        %1358 = vmatprep.subr.mxu0 0.0
        %1359 = vmatpush1.msra.mxu0 0.0
        %1360 = vmatprep.subr.mxu0 0.0
        %1361 = vmatpush1.msra.mxu0 0.0
        %1362 = vmatprep.subr.mxu0 0.0
        %1363 = vmatpush1.msra.mxu0 0.0
        %1364 = vmatprep.subr.mxu0 0.0
        %1365 = vmatpush1.msra.mxu0 0.0
        %1366 = vmatprep.subr.mxu0 0.0
        %1367 = vmatpush1.msra.mxu0 0.0
        %1368 = vmatprep.subr.mxu0 0.0
        %1369 = vmatpush1.msra.mxu0 0.0
        %1370 = vmatprep.subr.mxu0 0.0
        %1371 = vmatpush1.msra.mxu0 0.0
        %1372 = vmatprep.subr.mxu0 0.0
        %1373 = vmatpush1.msra.mxu0 0.0
        %1374 = vmatprep.subr.mxu0 %v1342
        %1375 = vmatpush1.msra.mxu0 %v1339
        %1376 = vmatprep.subr.mxu0 0.0
        %1377 = vmatpush2.msra.mxu0 0.0
        %1378 = vmatprep.subr.mxu0 0.0
        %1379 = vmatpush2.msra.mxu0 0.0
        %1380 = vmatprep.subr.mxu0 0.0
        %1381 = vmatpush2.msra.mxu0 0.0
        %1382 = vmatprep.subr.mxu0 0.0
        %1383 = vmatpush2.msra.mxu0 0.0
        %1384 = vmatprep.subr.mxu0 0.0
        %1385 = vmatpush2.msra.mxu0 0.0
        %1386 = vmatprep.subr.mxu0 0.0
        %1387 = vmatpush2.msra.mxu0 0.0
        %1388 = vmatprep.subr.mxu0 0.0
        %1389 = vmatpush2.msra.mxu0 0.0
        %1390 = vmatprep.subr.mxu0 0.0
        %1391 = vmatpush2.msra.mxu0 0.0
        %1392 = vmatprep.subr.mxu0 0.0
        %1393 = vmatpush2.msra.mxu0 0.0
        %1394 = vmatprep.subr.mxu0 0.0
        %1395 = vmatpush2.msra.mxu0 0.0
        %1396 = vmatprep.subr.mxu0 0.0
        %1397 = vmatpush2.msra.mxu0 0.0
        %1398 = vmatprep.subr.mxu0 0.0
        %1399 = vmatpush2.msra.mxu0 0.0
        %1400 = vmatprep.subr.mxu0 0.0
        %1401 = vmatpush2.msra.mxu0 0.0
        %1402 = vmatprep.subr.mxu0 0.0
        %1403 = vmatpush2.msra.mxu0 0.0
        %1404 = vmatprep.subr.mxu0 0.0
        %1405 = vmatpush2.msra.mxu0 0.0
        %1406 = vmatprep.subr.mxu0 0.0
        %1407 = vmatpush2.msra.mxu0 0.0
        %1408 = vmatprep.mubr.f32.mxu0 0.0
        %1409 = vmatmul.mubr.f32.gmra.mxu0 %v1335
        %v1410 = vpop.f32.mrf.mxu0
        %v1411 = vadd.f32 0.0, %v1410
        %v1412 = vpop.f32.mrf.mxu0
        %v1413 = vadd.f32 0.0, %v1412
        %1414 = vdwg.mxu0
        %v1415 = vmul.f32 %v1411, 0.5
        %v1416 = vmul.f32 %v1413, 0.5
        %v1417 = vmul.f32 %v1411, 0.70710677
        %v1418 = vmul.f32 %v1413, 0.70710677
        %v1419 = vand.u32 2147483647, %v1417
        %v1420 = vand.u32 2147483647, %v1418
        %v1421 = vmul.f32 %v1419, 0.3275911
        %v1422 = vmul.f32 %v1420, 0.3275911
        %v1423 = vadd.f32 %v1421, 1.0
        %v1424 = vadd.f32 %v1422, 1.0
        %v1425 = vrcp.pop %v1423
        %v1426 = vrcp.pop %v1424
        %v1427 = vmul.f32 %v1425, 1.0614054
        %v1428 = vmul.f32 %v1426, 1.0614054
        %v1429 = vadd.f32 %v1427, -1.4531521
        %v1430 = vadd.f32 %v1428, -1.4531521
        %v1431 = vmul.f32 %v1425, %v1429
        %v1432 = vmul.f32 %v1426, %v1430
        %v1433 = vadd.f32 %v1431, 1.4214138
        %v1434 = vadd.f32 %v1432, 1.4214138
        %v1435 = vmul.f32 %v1425, %v1433
        %v1436 = vmul.f32 %v1426, %v1434
        %v1437 = vadd.f32 %v1435, -0.28449672
        %v1438 = vadd.f32 %v1436, -0.28449672
        %v1439 = vmul.f32 %v1425, %v1437
        %v1440 = vmul.f32 %v1426, %v1438
        %v1441 = vadd.f32 %v1439, 0.2548296
        %v1442 = vadd.f32 %v1440, 0.2548296
        %v1443 = vmul.f32 %v1425, %v1441
        %v1444 = vmul.f32 %v1426, %v1442
        %v1445 = vsub.f32 0.0, %v1419
        %v1446 = vsub.f32 0.0, %v1420
        %v1447 = vmul.f32 %v1445, %v1419
        %v1448 = vmul.f32 %v1446, %v1420
        %v1449 = vmul.f32 %v1447, 1.442695
        %v1450 = vpow.pop %v1449
        %v1451 = vmul.f32 %v1448, 1.442695
        %v1452 = vpow.pop %v1451
        %v1453 = vmul.f32 %v1443, %v1450
        %v1454 = vmul.f32 %v1444, %v1452
        %v1455 = vsub.f32 1.0, %v1453
        %v1456 = vsub.f32 1.0, %v1454
        %vm1457 = vcmp.ge.f32.partialorder %v1417, 0.0
        %vm1458 = vcmp.ge.f32.partialorder %v1418, 0.0
        %v1459 = vsub.f32 0.0, %v1455
        %v1460 = vsub.f32 0.0, %v1456
        %v1461 = vsel %vm1457, %v1455, %v1459
        %v1462 = vsel %vm1458, %v1456, %v1460
        %v1463 = vadd.f32 %v1461, 1.0
        %v1464 = vadd.f32 %v1462, 1.0
        %v1465 = vmul.f32 %v1415, %v1463
        %v1466 = vmul.f32 %v1416, %v1464
        %v1469 = vrot.slane %v1465, 4
        %v1470 = vrot.slane %v1466, 4
        %1473 = vst [vmem:[%s271 + $0x10] sm:$0xf0] %v1469
        %1474 = vst [vmem:[%s271 + $0x18] sm:$0xf0] %v1470
        %1475 = vst [vmem:[%s271 + $0x20] sm:$0x3] %v1469
        %1476 = vst [vmem:[%s271 + $0x28] sm:$0x3] %v1470
        %s1477 = sand.u32 %s181, 1
        %s1478 = scalar_lea.sflag [#allocation3], %s1477
        %s1479 = sand.u32 %s181, 1
        %s1480 = smul.addr %s1479, 48
        %s1481 = scalar_lea.vmem [#allocation2], %s1480
        // Predicated region
        $region49: #{tpu_custom_call.1} parent=47 // pred_check
          %p1482 = pneg %p191
        $region50: #{tpu_custom_call.1} parent=47 // pred_check_branch
          %1484 = sbr.rel (%p1482) target = $region52
        $region51: #{tpu_custom_call.1} parent=47 // pred_region
          %s1486 = ssub.s32 768, 768
          %1487 = vsyncadd %s1478, %s1486
          %s1488 = smul.addr %s21, 6
          %s1489 = smul.addr %s1488, 128
          %s1490 = scalar_lea.hbm %s7, %s1489
          %s1491 = sshll.u32 %s1481, 4
          %s1492 = int_to_ptr.vmem [resolvable:$true] %s1491
          %1497 = dma.vmem_to_hbm [thread:$0]  %s1492, 768, %s1490, %s1478, 256, 256, 16
        $region52: #{tpu_custom_call.1} parent=47 // pred_fallthru
          _
      $region48: #{tpu_custom_call.1} parent=5 // pred_fallthru
        _
      %p1498 = scmp.le.s32.totalorder 2, %s16
      // Predicated region
      $region53: #{tpu_custom_call.1} parent=5 // pred_check
        %p1499 = pneg %p1498
      $region54: #{tpu_custom_call.1} parent=5 // pred_check_branch
        %1501 = sbr.rel (%p1499) target = $region56
      $region55: #{tpu_custom_call.1} parent=5 // pred_region
        %s1502 = ssub.s32 %s16, 2
        // Predicated region
        $region57: #{tpu_custom_call.1} parent=55 // pred_check
          %p1503 = pneg %p197
        $region58: #{tpu_custom_call.1} parent=55 // pred_check_branch
          %1505 = sbr.rel (%p1503) target = $region60
        $region59: #{tpu_custom_call.1} parent=55 // pred_region
          %s1506 = sand.u32 %s182, 1
          %s1507 = scalar_lea.sflag [#allocation3], %s1506
          %s1508 = sand.u32 %s182, 1
          %s1509 = smul.addr %s1508, 48
          %s1510 = scalar_lea.vmem [#allocation2], %s1509
          %1511 = dma.done %s1507, 768
        $region60: #{tpu_custom_call.1} parent=55 // pred_fallthru
          _
      $region56: #{tpu_custom_call.1} parent=5 // pred_fallthru
        _
    $region6: #{tpu_custom_call.1} parent=1 // loop_footer
      %s20 = sadd.s32 1, %s16
    $region7: #{tpu_custom_call.1} parent=1 // loop_footer_branch
      %15 = sbr.rel target = $region3
    $region8: #{tpu_custom_call.1} parent=1 // loop_exit
      _
    %1512 = vsyncpa [#allocation3], 1
    %s1513 = scalar_lea.sflag [#allocation3], 1
    %1514 = vsyncpa %s1513, 1

</llo_original>
